<compile_context>
chip_gen: v7x
topology: tpu7x:2x2x1
jax: 0.10.0
libtpu: 0.0.40
codegen_flags: <defaults>
</compile_context>

<pallas_src>
import math

import jax
import jax.numpy as jnp
from jax import lax
from jax.experimental import pallas as pl
from jax.experimental.pallas import tpu as pltpu


def _round_up(v, m):
    return -(-v // m) * m


def _choose_tiles(BN, P, C, A_W, B_H, itemsize):
    """Pick (TB, SB): slabs per grid step, and slabs per inner compute chunk."""
    lane = 128
    # Per-slab VMEM footprint of the streamed blocks (lane-padded, double-buffered).
    x_slab = P * _round_up(C, lane) * itemsize
    o_slab = A_W * _round_up(B_H, lane) * itemsize
    budget = 16 * 1024 * 1024  # conservative: fits v5e/v6e/v7x scoped VMEM
    cap = max(1, budget // (2 * (x_slab + o_slab)))
    # Target >= ~512 KiB of x per DMA so tiny DMAs / per-step overhead don't dominate.
    target = max(1, (512 * 1024) // max(1, P * C * itemsize))
    tb = max(1, min(BN, target, cap))
    # Keep the streamed x block's leading dim (tb*P) a multiple of 8 sublanes whenever
    # the block does not span the full array.
    align = 8 // math.gcd(P, 8)
    if tb < BN:
        tb = min(BN, max(align, (tb // align) * align))
    if tb < BN and (tb * P) % 8 != 0:
        tb = min(BN, _round_up(tb, align))
    # Inner chunk: ~256 rows in the folded first matmul; must divide TB.
    sb = max(1, min(tb, 256 // max(1, P)))
    while tb % sb:
        sb -= 1
    return tb, sb


def _make_kernel(TB, SB, P, C, A_W, B_H):
    num_chunks = TB // SB

    def kernel(x_ref, a_ref, b_ref, o_ref):
        # x_ref: (TB*P, C)  a_ref: (A_W, C)  b_ref: (P, B_H)  o_ref: (TB, A_W, B_H)
        a = a_ref[...]          # resident weights (constant index_map, loaded once/step)
        b = b_ref[...]

        def process_chunk(row0, slab0):
            # Folded first matmul over SB slabs: (SB*P, C) x (A_W, C)^T -> (SB*P, A_W).
            xj = x_ref[pl.ds(row0, SB * P), :]
            tj = lax.dot_general(
                xj, a,
                dimension_numbers=(((1,), (1,)), ((), ())),
                preferred_element_type=jnp.float32)
            # Second matmul contracts P per slab: (P, A_W) x (P, B_H) -> (A_W, B_H).
            for s in range(SB):                       # static unroll over the chunk
                t_s = tj[s * P:(s + 1) * P, :]        # (P, A_W), sublane-aligned slice
                o_s = lax.dot_general(
                    t_s, b,
                    dimension_numbers=(((0,), (0,)), ((), ())),
                    preferred_element_type=jnp.float32)
                o_ref[slab0 + s] = o_s.astype(o_ref.dtype)

        if num_chunks == 1:
            process_chunk(0, 0)
        else:
            def body(jc, carry):
                row0 = pl.multiple_of(jc * (SB * P), SB * P)
                process_chunk(row0, jc * SB)
                return carry
            lax.fori_loop(0, num_chunks, body, jnp.int32(0),
                          unroll=bool(num_chunks <= 4))

    return kernel


@jax.jit
def sepnet_linear_qkv(x, A_ref, B_ref):
    """x: [B, N, P, C], A_ref: [A_W, C], B_ref: [P, B_H] -> [B, N, A_W, B_H]."""
    Bsz, N, P, C = x.shape
    A_W, A_H = A_ref.shape
    B_W, B_H = B_ref.shape
    assert A_H == C, "A_ref second dim must equal input_channels"
    assert B_W == P, "B_ref first dim must equal input_height*input_width"

    itemsize = jnp.dtype(x.dtype).itemsize
    BN = Bsz * N
    TB, SB = _choose_tiles(BN, P, C, A_W, B_H, itemsize)

    BN_pad = _round_up(BN, TB)
    x_flat = x.reshape(BN, P, C)
    if BN_pad != BN:
        x_flat = jnp.pad(x_flat, ((0, BN_pad - BN), (0, 0), (0, 0)))
    # Flatten slabs to rows (metadata-only reshape in XLA) so the kernel needs no
    # in-kernel reshape for the folded first matmul.
    x_rows = x_flat.reshape(BN_pad * P, C)

    num_blocks = BN_pad // TB

    # VMEM sizing: lane-padded, double-buffered streamed blocks + resident weights.
    x_block = TB * P * _round_up(C, 128) * itemsize
    o_block = TB * A_W * _round_up(B_H, 128) * itemsize
    w_bytes = (_round_up(A_W, 8) * _round_up(C, 128)
               + _round_up(P, 8) * _round_up(B_H, 128)) * itemsize
    need = 2 * (x_block + o_block) + 2 * w_bytes
    # Leave headroom; cap below the v7x per-TC physical VMEM (64 MiB).
    vmem_limit = int(min(max(2 * need + (4 << 20), 32 << 20), 48 << 20))

    kernel = _make_kernel(TB, SB, P, C, A_W, B_H)

    out_pad = pl.pallas_call(
        kernel,
        out_shape=jax.ShapeDtypeStruct((BN_pad, A_W, B_H), x.dtype),
        grid=(num_blocks,),
        in_specs=[
            pl.BlockSpec((TB * P, C), lambda i: (i, 0)),   # streamed activations
            pl.BlockSpec((A_W, A_H), lambda i: (0, 0)),    # resident weight A
            pl.BlockSpec((B_W, B_H), lambda i: (0, 0)),    # resident weight B
        ],
        out_specs=pl.BlockSpec((TB, A_W, B_H), lambda i: (i, 0, 0)),
        compiler_params=pltpu.CompilerParams(
            dimension_semantics=("parallel",),
            vmem_limit_bytes=vmem_limit,
        ),
    )(x_rows, A_ref, B_ref)

    return out_pad[:BN].reshape(Bsz, N, A_W, B_H)


def kaiming_uniform(key, shape, a=math.sqrt(5), dtype=jnp.float32):
    """Matches torch.nn.init.kaiming_uniform_ for a 2D tensor (fan_in = shape[1])."""
    fan_in = shape[1]
    gain = math.sqrt(2.0 / (1.0 + a * a))
    bound = gain * math.sqrt(3.0 / fan_in)
    return jax.random.uniform(key, shape, dtype=dtype, minval=-bound, maxval=bound)


def sepnet_qkv_reference(x, A_ref, B_ref):
    # Pure JAX reference mirroring the PyTorch forward.
    temp = jnp.einsum("bnpc,ac->bnpa", x, A_ref)          # x @ A^T
    temp = jnp.swapaxes(temp, -1, -2)                     # [B, N, A_W, P]
    return jnp.einsum("bnap,ph->bnah", temp, B_ref)       # @ B


if __name__ == "__main__":
    # x = [Batch_size, patch_number+1, input_height*input_width, input_channels]
    Bsz, N, P, C = 2, 8, 16, 32
    A_W, A_H = 32, C      # A_ref: (A_W, A_H), A_H must equal input_channels
    B_W, B_H = P, 16      # B_ref: (B_W, B_H), B_W must equal input_height*input_width

    key = jax.random.PRNGKey(0)
    kx, ka, kb = jax.random.split(key, 3)

    x = jax.random.normal(kx, (Bsz, N, P, C), dtype=jnp.float32)
    A_param = kaiming_uniform(ka, (A_W, A_H))
    B_param = kaiming_uniform(kb, (B_W, B_H))

    out = sepnet_linear_qkv(x, A_param, B_param)
    out = jax.block_until_ready(out)

    ref = sepnet_qkv_reference(x, A_param, B_param)
    assert out.shape == (Bsz, N, A_W, B_H), out.shape
    assert jnp.allclose(out, ref, atol=1e-4, rtol=1e-4), "mismatch vs. reference"

    print("KERNEL_OK")
</pallas_src>

<mosaic_0001>
module attributes {stable_mosaic.version = 11 : i64} {
  func.func @kernel(%arg0: i32, %arg1: memref<256x32xf32, #tpu.memory_space<vmem>>, %arg2: memref<32x32xf32, #tpu.memory_space<vmem>>, %arg3: memref<16x16xf32, #tpu.memory_space<vmem>>, %arg4: memref<16x32x16xf32, #tpu.memory_space<vmem>>) attributes {dimension_semantics = [#tpu.dimension_semantics<parallel>], iteration_bounds = array<i64: 1>, scalar_prefetch = 0 : i64, scratch_operands = 0 : i64, tpu.core_type = #tpu.core_type<tc>, window_params = [{transform_indices = @transform_0, window_bounds = array<i64: 256, 32>}, {pipeline_mode = #tpu.pipeline_mode<synchronous>, transform_indices = @transform_1, window_bounds = array<i64: 32, 32>}, {pipeline_mode = #tpu.pipeline_mode<synchronous>, transform_indices = @transform_2, window_bounds = array<i64: 16, 16>}, {transform_indices = @transform_3, window_bounds = array<i64: 16, 32, 16>}]} {
    %c0 = arith.constant 0 : index
    %c0_0 = arith.constant 0 : index
    %0 = vector.load %arg2[%c0, %c0_0] : memref<32x32xf32, #tpu.memory_space<vmem>>, vector<32x32xf32>
    %c0_1 = arith.constant 0 : index
    %c0_2 = arith.constant 0 : index
    %1 = vector.load %arg3[%c0_1, %c0_2] : memref<16x16xf32, #tpu.memory_space<vmem>>, vector<16x16xf32>
    %c0_3 = arith.constant 0 : index
    %c0_4 = arith.constant 0 : index
    %2 = vector.load %arg1[%c0_3, %c0_4] : memref<256x32xf32, #tpu.memory_space<vmem>>, vector<256x32xf32>
    %cst = arith.constant dense<0.000000e+00> : vector<256x32xf32>
    %3 = tpu.matmul %2, %0, %cst {dimension_numbers = #tpu.dot_dimension_numbers<[1], [1], [0], [0], [0, 0, 1, 0], [], []>} : vector<256x32xf32>, vector<32x32xf32>, vector<256x32xf32> -> vector<256x32xf32>
    %4 = vector.extract_strided_slice %3 {offsets = [0, 0], sizes = [16, 32], strides = [1, 1]} : vector<256x32xf32> to vector<16x32xf32>
    %cst_5 = arith.constant dense<0.000000e+00> : vector<32x16xf32>
    %5 = tpu.matmul %4, %1, %cst_5 {dimension_numbers = #tpu.dot_dimension_numbers<[0], [0], [1], [1], [0, 1, 1, 1], [], []>} : vector<16x32xf32>, vector<16x16xf32>, vector<32x16xf32> -> vector<32x16xf32>
    %c0_6 = arith.constant 0 : index
    %c0_7 = arith.constant 0 : index
    %c0_8 = arith.constant 0 : index
    %6 = vector.load %arg4[%c0_6, %c0_7, %c0_8] : memref<16x32x16xf32, #tpu.memory_space<vmem>>, vector<1x32x16xf32>
    %7 = vector.shape_cast %6 : vector<1x32x16xf32> to vector<32x16xf32>
    %8 = vector.shape_cast %5 : vector<32x16xf32> to vector<1x32x16xf32>
    tpu.vector_store %arg4[%c0_6, %c0_7, %c0_8], %8 {strides = array<i32>} : memref<16x32x16xf32, #tpu.memory_space<vmem>>, vector<1x32x16xf32>,
    %9 = vector.extract_strided_slice %3 {offsets = [16, 0], sizes = [16, 32], strides = [1, 1]} : vector<256x32xf32> to vector<16x32xf32>
    %cst_9 = arith.constant dense<0.000000e+00> : vector<32x16xf32>
    %10 = tpu.matmul %9, %1, %cst_9 {dimension_numbers = #tpu.dot_dimension_numbers<[0], [0], [1], [1], [0, 1, 1, 1], [], []>} : vector<16x32xf32>, vector<16x16xf32>, vector<32x16xf32> -> vector<32x16xf32>
    %c1 = arith.constant 1 : index
    %c0_10 = arith.constant 0 : index
    %c0_11 = arith.constant 0 : index
    %11 = vector.load %arg4[%c1, %c0_10, %c0_11] : memref<16x32x16xf32, #tpu.memory_space<vmem>>, vector<1x32x16xf32>
    %12 = vector.shape_cast %11 : vector<1x32x16xf32> to vector<32x16xf32>
    %13 = vector.shape_cast %10 : vector<32x16xf32> to vector<1x32x16xf32>
    tpu.vector_store %arg4[%c1, %c0_10, %c0_11], %13 {strides = array<i32>} : memref<16x32x16xf32, #tpu.memory_space<vmem>>, vector<1x32x16xf32>,
    %14 = vector.extract_strided_slice %3 {offsets = [32, 0], sizes = [16, 32], strides = [1, 1]} : vector<256x32xf32> to vector<16x32xf32>
    %cst_12 = arith.constant dense<0.000000e+00> : vector<32x16xf32>
    %15 = tpu.matmul %14, %1, %cst_12 {dimension_numbers = #tpu.dot_dimension_numbers<[0], [0], [1], [1], [0, 1, 1, 1], [], []>} : vector<16x32xf32>, vector<16x16xf32>, vector<32x16xf32> -> vector<32x16xf32>
    %c2 = arith.constant 2 : index
    %c0_13 = arith.constant 0 : index
    %c0_14 = arith.constant 0 : index
    %16 = vector.load %arg4[%c2, %c0_13, %c0_14] : memref<16x32x16xf32, #tpu.memory_space<vmem>>, vector<1x32x16xf32>
    %17 = vector.shape_cast %16 : vector<1x32x16xf32> to vector<32x16xf32>
    %18 = vector.shape_cast %15 : vector<32x16xf32> to vector<1x32x16xf32>
    tpu.vector_store %arg4[%c2, %c0_13, %c0_14], %18 {strides = array<i32>} : memref<16x32x16xf32, #tpu.memory_space<vmem>>, vector<1x32x16xf32>,
    %19 = vector.extract_strided_slice %3 {offsets = [48, 0], sizes = [16, 32], strides = [1, 1]} : vector<256x32xf32> to vector<16x32xf32>
    %cst_15 = arith.constant dense<0.000000e+00> : vector<32x16xf32>
    %20 = tpu.matmul %19, %1, %cst_15 {dimension_numbers = #tpu.dot_dimension_numbers<[0], [0], [1], [1], [0, 1, 1, 1], [], []>} : vector<16x32xf32>, vector<16x16xf32>, vector<32x16xf32> -> vector<32x16xf32>
    %c3 = arith.constant 3 : index
    %c0_16 = arith.constant 0 : index
    %c0_17 = arith.constant 0 : index
    %21 = vector.load %arg4[%c3, %c0_16, %c0_17] : memref<16x32x16xf32, #tpu.memory_space<vmem>>, vector<1x32x16xf32>
    %22 = vector.shape_cast %21 : vector<1x32x16xf32> to vector<32x16xf32>
    %23 = vector.shape_cast %20 : vector<32x16xf32> to vector<1x32x16xf32>
    tpu.vector_store %arg4[%c3, %c0_16, %c0_17], %23 {strides = array<i32>} : memref<16x32x16xf32, #tpu.memory_space<vmem>>, vector<1x32x16xf32>,
    %24 = vector.extract_strided_slice %3 {offsets = [64, 0], sizes = [16, 32], strides = [1, 1]} : vector<256x32xf32> to vector<16x32xf32>
    %cst_18 = arith.constant dense<0.000000e+00> : vector<32x16xf32>
    %25 = tpu.matmul %24, %1, %cst_18 {dimension_numbers = #tpu.dot_dimension_numbers<[0], [0], [1], [1], [0, 1, 1, 1], [], []>} : vector<16x32xf32>, vector<16x16xf32>, vector<32x16xf32> -> vector<32x16xf32>
    %c4 = arith.constant 4 : index
    %c0_19 = arith.constant 0 : index
    %c0_20 = arith.constant 0 : index
    %26 = vector.load %arg4[%c4, %c0_19, %c0_20] : memref<16x32x16xf32, #tpu.memory_space<vmem>>, vector<1x32x16xf32>
    %27 = vector.shape_cast %26 : vector<1x32x16xf32> to vector<32x16xf32>
    %28 = vector.shape_cast %25 : vector<32x16xf32> to vector<1x32x16xf32>
    tpu.vector_store %arg4[%c4, %c0_19, %c0_20], %28 {strides = array<i32>} : memref<16x32x16xf32, #tpu.memory_space<vmem>>, vector<1x32x16xf32>,
    %29 = vector.extract_strided_slice %3 {offsets = [80, 0], sizes = [16, 32], strides = [1, 1]} : vector<256x32xf32> to vector<16x32xf32>
    %cst_21 = arith.constant dense<0.000000e+00> : vector<32x16xf32>
    %30 = tpu.matmul %29, %1, %cst_21 {dimension_numbers = #tpu.dot_dimension_numbers<[0], [0], [1], [1], [0, 1, 1, 1], [], []>} : vector<16x32xf32>, vector<16x16xf32>, vector<32x16xf32> -> vector<32x16xf32>
    %c5 = arith.constant 5 : index
    %c0_22 = arith.constant 0 : index
    %c0_23 = arith.constant 0 : index
    %31 = vector.load %arg4[%c5, %c0_22, %c0_23] : memref<16x32x16xf32, #tpu.memory_space<vmem>>, vector<1x32x16xf32>
    %32 = vector.shape_cast %31 : vector<1x32x16xf32> to vector<32x16xf32>
    %33 = vector.shape_cast %30 : vector<32x16xf32> to vector<1x32x16xf32>
    tpu.vector_store %arg4[%c5, %c0_22, %c0_23], %33 {strides = array<i32>} : memref<16x32x16xf32, #tpu.memory_space<vmem>>, vector<1x32x16xf32>,
    %34 = vector.extract_strided_slice %3 {offsets = [96, 0], sizes = [16, 32], strides = [1, 1]} : vector<256x32xf32> to vector<16x32xf32>
    %cst_24 = arith.constant dense<0.000000e+00> : vector<32x16xf32>
    %35 = tpu.matmul %34, %1, %cst_24 {dimension_numbers = #tpu.dot_dimension_numbers<[0], [0], [1], [1], [0, 1, 1, 1], [], []>} : vector<16x32xf32>, vector<16x16xf32>, vector<32x16xf32> -> vector<32x16xf32>
    %c6 = arith.constant 6 : index
    %c0_25 = arith.constant 0 : index
    %c0_26 = arith.constant 0 : index
    %36 = vector.load %arg4[%c6, %c0_25, %c0_26] : memref<16x32x16xf32, #tpu.memory_space<vmem>>, vector<1x32x16xf32>
    %37 = vector.shape_cast %36 : vector<1x32x16xf32> to vector<32x16xf32>
    %38 = vector.shape_cast %35 : vector<32x16xf32> to vector<1x32x16xf32>
    tpu.vector_store %arg4[%c6, %c0_25, %c0_26], %38 {strides = array<i32>} : memref<16x32x16xf32, #tpu.memory_space<vmem>>, vector<1x32x16xf32>,
    %39 = vector.extract_strided_slice %3 {offsets = [112, 0], sizes = [16, 32], strides = [1, 1]} : vector<256x32xf32> to vector<16x32xf32>
    %cst_27 = arith.constant dense<0.000000e+00> : vector<32x16xf32>
    %40 = tpu.matmul %39, %1, %cst_27 {dimension_numbers = #tpu.dot_dimension_numbers<[0], [0], [1], [1], [0, 1, 1, 1], [], []>} : vector<16x32xf32>, vector<16x16xf32>, vector<32x16xf32> -> vector<32x16xf32>
    %c7 = arith.constant 7 : index
    %c0_28 = arith.constant 0 : index
    %c0_29 = arith.constant 0 : index
    %41 = vector.load %arg4[%c7, %c0_28, %c0_29] : memref<16x32x16xf32, #tpu.memory_space<vmem>>, vector<1x32x16xf32>
    %42 = vector.shape_cast %41 : vector<1x32x16xf32> to vector<32x16xf32>
    %43 = vector.shape_cast %40 : vector<32x16xf32> to vector<1x32x16xf32>
    tpu.vector_store %arg4[%c7, %c0_28, %c0_29], %43 {strides = array<i32>} : memref<16x32x16xf32, #tpu.memory_space<vmem>>, vector<1x32x16xf32>,
    %44 = vector.extract_strided_slice %3 {offsets = [128, 0], sizes = [16, 32], strides = [1, 1]} : vector<256x32xf32> to vector<16x32xf32>
    %cst_30 = arith.constant dense<0.000000e+00> : vector<32x16xf32>
    %45 = tpu.matmul %44, %1, %cst_30 {dimension_numbers = #tpu.dot_dimension_numbers<[0], [0], [1], [1], [0, 1, 1, 1], [], []>} : vector<16x32xf32>, vector<16x16xf32>, vector<32x16xf32> -> vector<32x16xf32>
    %c8 = arith.constant 8 : index
    %c0_31 = arith.constant 0 : index
    %c0_32 = arith.constant 0 : index
    %46 = vector.load %arg4[%c8, %c0_31, %c0_32] : memref<16x32x16xf32, #tpu.memory_space<vmem>>, vector<1x32x16xf32>
    %47 = vector.shape_cast %46 : vector<1x32x16xf32> to vector<32x16xf32>
    %48 = vector.shape_cast %45 : vector<32x16xf32> to vector<1x32x16xf32>
    tpu.vector_store %arg4[%c8, %c0_31, %c0_32], %48 {strides = array<i32>} : memref<16x32x16xf32, #tpu.memory_space<vmem>>, vector<1x32x16xf32>,
    %49 = vector.extract_strided_slice %3 {offsets = [144, 0], sizes = [16, 32], strides = [1, 1]} : vector<256x32xf32> to vector<16x32xf32>
    %cst_33 = arith.constant dense<0.000000e+00> : vector<32x16xf32>
    %50 = tpu.matmul %49, %1, %cst_33 {dimension_numbers = #tpu.dot_dimension_numbers<[0], [0], [1], [1], [0, 1, 1, 1], [], []>} : vector<16x32xf32>, vector<16x16xf32>, vector<32x16xf32> -> vector<32x16xf32>
    %c9 = arith.constant 9 : index
    %c0_34 = arith.constant 0 : index
    %c0_35 = arith.constant 0 : index
    %51 = vector.load %arg4[%c9, %c0_34, %c0_35] : memref<16x32x16xf32, #tpu.memory_space<vmem>>, vector<1x32x16xf32>
    %52 = vector.shape_cast %51 : vector<1x32x16xf32> to vector<32x16xf32>
    %53 = vector.shape_cast %50 : vector<32x16xf32> to vector<1x32x16xf32>
    tpu.vector_store %arg4[%c9, %c0_34, %c0_35], %53 {strides = array<i32>} : memref<16x32x16xf32, #tpu.memory_space<vmem>>, vector<1x32x16xf32>,
    %54 = vector.extract_strided_slice %3 {offsets = [160, 0], sizes = [16, 32], strides = [1, 1]} : vector<256x32xf32> to vector<16x32xf32>
    %cst_36 = arith.constant dense<0.000000e+00> : vector<32x16xf32>
    %55 = tpu.matmul %54, %1, %cst_36 {dimension_numbers = #tpu.dot_dimension_numbers<[0], [0], [1], [1], [0, 1, 1, 1], [], []>} : vector<16x32xf32>, vector<16x16xf32>, vector<32x16xf32> -> vector<32x16xf32>
    %c10 = arith.constant 10 : index
    %c0_37 = arith.constant 0 : index
    %c0_38 = arith.constant 0 : index
    %56 = vector.load %arg4[%c10, %c0_37, %c0_38] : memref<16x32x16xf32, #tpu.memory_space<vmem>>, vector<1x32x16xf32>
    %57 = vector.shape_cast %56 : vector<1x32x16xf32> to vector<32x16xf32>
    %58 = vector.shape_cast %55 : vector<32x16xf32> to vector<1x32x16xf32>
    tpu.vector_store %arg4[%c10, %c0_37, %c0_38], %58 {strides = array<i32>} : memref<16x32x16xf32, #tpu.memory_space<vmem>>, vector<1x32x16xf32>,
    %59 = vector.extract_strided_slice %3 {offsets = [176, 0], sizes = [16, 32], strides = [1, 1]} : vector<256x32xf32> to vector<16x32xf32>
    %cst_39 = arith.constant dense<0.000000e+00> : vector<32x16xf32>
    %60 = tpu.matmul %59, %1, %cst_39 {dimension_numbers = #tpu.dot_dimension_numbers<[0], [0], [1], [1], [0, 1, 1, 1], [], []>} : vector<16x32xf32>, vector<16x16xf32>, vector<32x16xf32> -> vector<32x16xf32>
    %c11 = arith.constant 11 : index
    %c0_40 = arith.constant 0 : index
    %c0_41 = arith.constant 0 : index
    %61 = vector.load %arg4[%c11, %c0_40, %c0_41] : memref<16x32x16xf32, #tpu.memory_space<vmem>>, vector<1x32x16xf32>
    %62 = vector.shape_cast %61 : vector<1x32x16xf32> to vector<32x16xf32>
    %63 = vector.shape_cast %60 : vector<32x16xf32> to vector<1x32x16xf32>
    tpu.vector_store %arg4[%c11, %c0_40, %c0_41], %63 {strides = array<i32>} : memref<16x32x16xf32, #tpu.memory_space<vmem>>, vector<1x32x16xf32>,
    %64 = vector.extract_strided_slice %3 {offsets = [192, 0], sizes = [16, 32], strides = [1, 1]} : vector<256x32xf32> to vector<16x32xf32>
    %cst_42 = arith.constant dense<0.000000e+00> : vector<32x16xf32>
    %65 = tpu.matmul %64, %1, %cst_42 {dimension_numbers = #tpu.dot_dimension_numbers<[0], [0], [1], [1], [0, 1, 1, 1], [], []>} : vector<16x32xf32>, vector<16x16xf32>, vector<32x16xf32> -> vector<32x16xf32>
    %c12 = arith.constant 12 : index
    %c0_43 = arith.constant 0 : index
    %c0_44 = arith.constant 0 : index
    %66 = vector.load %arg4[%c12, %c0_43, %c0_44] : memref<16x32x16xf32, #tpu.memory_space<vmem>>, vector<1x32x16xf32>
    %67 = vector.shape_cast %66 : vector<1x32x16xf32> to vector<32x16xf32>
    %68 = vector.shape_cast %65 : vector<32x16xf32> to vector<1x32x16xf32>
    tpu.vector_store %arg4[%c12, %c0_43, %c0_44], %68 {strides = array<i32>} : memref<16x32x16xf32, #tpu.memory_space<vmem>>, vector<1x32x16xf32>,
    %69 = vector.extract_strided_slice %3 {offsets = [208, 0], sizes = [16, 32], strides = [1, 1]} : vector<256x32xf32> to vector<16x32xf32>
    %cst_45 = arith.constant dense<0.000000e+00> : vector<32x16xf32>
    %70 = tpu.matmul %69, %1, %cst_45 {dimension_numbers = #tpu.dot_dimension_numbers<[0], [0], [1], [1], [0, 1, 1, 1], [], []>} : vector<16x32xf32>, vector<16x16xf32>, vector<32x16xf32> -> vector<32x16xf32>
    %c13 = arith.constant 13 : index
    %c0_46 = arith.constant 0 : index
    %c0_47 = arith.constant 0 : index
    %71 = vector.load %arg4[%c13, %c0_46, %c0_47] : memref<16x32x16xf32, #tpu.memory_space<vmem>>, vector<1x32x16xf32>
    %72 = vector.shape_cast %71 : vector<1x32x16xf32> to vector<32x16xf32>
    %73 = vector.shape_cast %70 : vector<32x16xf32> to vector<1x32x16xf32>
    tpu.vector_store %arg4[%c13, %c0_46, %c0_47], %73 {strides = array<i32>} : memref<16x32x16xf32, #tpu.memory_space<vmem>>, vector<1x32x16xf32>,
    %74 = vector.extract_strided_slice %3 {offsets = [224, 0], sizes = [16, 32], strides = [1, 1]} : vector<256x32xf32> to vector<16x32xf32>
    %cst_48 = arith.constant dense<0.000000e+00> : vector<32x16xf32>
    %75 = tpu.matmul %74, %1, %cst_48 {dimension_numbers = #tpu.dot_dimension_numbers<[0], [0], [1], [1], [0, 1, 1, 1], [], []>} : vector<16x32xf32>, vector<16x16xf32>, vector<32x16xf32> -> vector<32x16xf32>
    %c14 = arith.constant 14 : index
    %c0_49 = arith.constant 0 : index
    %c0_50 = arith.constant 0 : index
    %76 = vector.load %arg4[%c14, %c0_49, %c0_50] : memref<16x32x16xf32, #tpu.memory_space<vmem>>, vector<1x32x16xf32>
    %77 = vector.shape_cast %76 : vector<1x32x16xf32> to vector<32x16xf32>
    %78 = vector.shape_cast %75 : vector<32x16xf32> to vector<1x32x16xf32>
    tpu.vector_store %arg4[%c14, %c0_49, %c0_50], %78 {strides = array<i32>} : memref<16x32x16xf32, #tpu.memory_space<vmem>>, vector<1x32x16xf32>,
    %79 = vector.extract_strided_slice %3 {offsets = [240, 0], sizes = [16, 32], strides = [1, 1]} : vector<256x32xf32> to vector<16x32xf32>
    %cst_51 = arith.constant dense<0.000000e+00> : vector<32x16xf32>
    %80 = tpu.matmul %79, %1, %cst_51 {dimension_numbers = #tpu.dot_dimension_numbers<[0], [0], [1], [1], [0, 1, 1, 1], [], []>} : vector<16x32xf32>, vector<16x16xf32>, vector<32x16xf32> -> vector<32x16xf32>
    %c15 = arith.constant 15 : index
    %c0_52 = arith.constant 0 : index
    %c0_53 = arith.constant 0 : index
    %81 = vector.load %arg4[%c15, %c0_52, %c0_53] : memref<16x32x16xf32, #tpu.memory_space<vmem>>, vector<1x32x16xf32>
    %82 = vector.shape_cast %81 : vector<1x32x16xf32> to vector<32x16xf32>
    %83 = vector.shape_cast %80 : vector<32x16xf32> to vector<1x32x16xf32>
    tpu.vector_store %arg4[%c15, %c0_52, %c0_53], %83 {strides = array<i32>} : memref<16x32x16xf32, #tpu.memory_space<vmem>>, vector<1x32x16xf32>,
    return
  }
  func.func @transform_0(%arg0: i32) -> (i32, i32) {
    %c0_i32 = arith.constant 0 : i32
    %c0_i32_0 = arith.constant 0 : i32
    return %arg0, %c0_i32 : i32, i32
  }
  func.func @transform_1(%arg0: i32) -> (i32, i32) {
    %c0_i32 = arith.constant 0 : i32
    %c0_i32_0 = arith.constant 0 : i32
    %c0_i32_1 = arith.constant 0 : i32
    return %c0_i32, %c0_i32_0 : i32, i32
  }
  func.func @transform_2(%arg0: i32) -> (i32, i32) {
    %c0_i32 = arith.constant 0 : i32
    %c0_i32_0 = arith.constant 0 : i32
    %c0_i32_1 = arith.constant 0 : i32
    return %c0_i32, %c0_i32_0 : i32, i32
  }
  func.func @transform_3(%arg0: i32) -> (i32, i32, i32) {
    %c0_i32 = arith.constant 0 : i32
    %c0_i32_0 = arith.constant 0 : i32
    %c0_i32_1 = arith.constant 0 : i32
    return %arg0, %c0_i32, %c0_i32_0 : i32, i32, i32
  }
}

</mosaic_0001>

<llo_original>
// kernel: sepnet_linear_qkv.1
$region0: #{sepnet_linear_qkv.1}
  #allocation0 [shape = 'u32[]', space=smem, size = 0x4, offset = 0x4, fixed_abs, tag = 'smem constant byte address 0x4 - core index']
  #allocation1 [shape = 'u32[144,128]{1,0:T(1,128)}', space=vmem, size = 0x12000, scoped, tag = 'internal scratch']
  %s0 = inlined_call_operand.hbm [shape: f32[256,32], index: 0, kind: input, shape index: {}]
  %s1 = inlined_call_operand.hbm [shape: f32[32,32], index: 1, kind: input, shape index: {}]
  %s2 = inlined_call_operand.hbm [shape: f32[16,16], index: 2, kind: input, shape index: {}]
  %s3 = inlined_call_operand.vmem [shape: f32[16,32,16], index: 3, kind: output, shape index: {}]
  %s4 = sld [smem:[#allocation0]]
  $region34: #{sepnet_linear_qkv.1} parent=0
    _
  %s6 = ssub.s32 1, %s4
  %s7 = scalar_select 0, %s6, %s4
  $region1: #{sepnet_linear_qkv.1} parent=0
    #allocation2 [shape = 'u8[131072]{0}', space=vmem, size = 0x20000, scoped, tag = 'input window, operand 0, single buffered']
    #allocation3 [shape = 's32[1]{0}', space=sflag, size = 0x4, scoped, tag = 'scoped memory for sepnet_linear_qkv.1']
    #allocation4 [shape = 'u8[16384]{0}', space=vmem, size = 0x4000, scoped, tag = 'input window, operand 1, single buffered']
    #allocation5 [shape = 's32[1]{0}', space=sflag, size = 0x4, scoped, tag = 'scoped memory for sepnet_linear_qkv.1']
    #allocation6 [shape = 'u8[8192]{0}', space=vmem, size = 0x2000, scoped, tag = 'input window, operand 2, single buffered']
    %8 = vsyncpa [#allocation3], 0
    %9 = vsyncpa [#allocation5], 0
    // Predicated region
    $region2: #{sepnet_linear_qkv.1} parent=1 // pred_check
      _
    $region3: #{sepnet_linear_qkv.1} parent=1 // pred_check_branch
      %11 = sbr.rel (0) target = $region5
    $region4: #{sepnet_linear_qkv.1} parent=1 // pred_region
      %s13 = ssub.s32 4096, 4096
      %14 = vsyncadd [#allocation3], %s13
      %s15 = sshll.u32 [#allocation2], 4
      %s16 = int_to_ptr.vmem [resolvable:$true] %s15
      %21 = dma.hbm_to_vmem [thread:$0]  %s0, 4096, %s16, [#allocation3], 128, 128, 8
    $region5: #{sepnet_linear_qkv.1} parent=1 // pred_fallthru
      _
    // Predicated region
    $region6: #{sepnet_linear_qkv.1} parent=1 // pred_check
      _
    $region7: #{sepnet_linear_qkv.1} parent=1 // pred_check_branch
      %23 = sbr.rel (0) target = $region9
    $region8: #{sepnet_linear_qkv.1} parent=1 // pred_region
      %s25 = ssub.s32 512, 512
      %26 = vsyncadd [#allocation5], %s25
      %s27 = sshll.u32 [#allocation4], 4
      %s28 = int_to_ptr.vmem [resolvable:$true] %s27
      %33 = dma.hbm_to_vmem [thread:$0]  %s1, 512, %s28, [#allocation5], 128, 128, 8
    $region9: #{sepnet_linear_qkv.1} parent=1 // pred_fallthru
      _
    // Predicated region
    $region10: #{sepnet_linear_qkv.1} parent=1 // pred_check
      _
    $region11: #{sepnet_linear_qkv.1} parent=1 // pred_check_branch
      %35 = sbr.rel (0) target = $region13
    $region12: #{sepnet_linear_qkv.1} parent=1 // pred_region
      %s37 = ssub.s32 256, 256
      %38 = vsyncadd [#allocation5], %s37
      %s39 = sshll.u32 [#allocation6], 4
      %s40 = int_to_ptr.vmem [resolvable:$true] %s39
      %45 = dma.hbm_to_vmem [thread:$0]  %s2, 256, %s40, [#allocation5], 128, 128, 8
    $region13: #{sepnet_linear_qkv.1} parent=1 // pred_fallthru
      _
    // Predicated region
    $region14: #{sepnet_linear_qkv.1} parent=1 // pred_check
      _
    $region15: #{sepnet_linear_qkv.1} parent=1 // pred_check_branch
      %47 = sbr.rel (0) target = $region17
    $region16: #{sepnet_linear_qkv.1} parent=1 // pred_region
      %48 = dma.done [#allocation3], 4096
    $region17: #{sepnet_linear_qkv.1} parent=1 // pred_fallthru
      _
    // Predicated region
    $region18: #{sepnet_linear_qkv.1} parent=1 // pred_check
      _
    $region19: #{sepnet_linear_qkv.1} parent=1 // pred_check_branch
      %50 = sbr.rel (0) target = $region21
    $region20: #{sepnet_linear_qkv.1} parent=1 // pred_region
      %51 = dma.done [#allocation5], 512
    $region21: #{sepnet_linear_qkv.1} parent=1 // pred_fallthru
      _
    // Predicated region
    $region22: #{sepnet_linear_qkv.1} parent=1 // pred_check
      _
    $region23: #{sepnet_linear_qkv.1} parent=1 // pred_check_branch
      %53 = sbr.rel (0) target = $region25
    $region24: #{sepnet_linear_qkv.1} parent=1 // pred_region
      %54 = dma.done [#allocation5], 256
    $region25: #{sepnet_linear_qkv.1} parent=1 // pred_fallthru
      _
    %v55 = vld [vmem:[#allocation4] sm:$0xff]
    %v56 = vld [vmem:[#allocation4 + $0x8] sm:$0xff]
    %v57 = vld [vmem:[#allocation4 + $0x10] sm:$0xff]
    %v58 = vld [vmem:[#allocation4 + $0x18] sm:$0xff]
    %v59 = vld [vmem:[#allocation6] sm:$0xff]
    %v60 = vld [vmem:[#allocation6 + $0x8] sm:$0xff]
    %v61 = vld [vmem:[#allocation2] sm:$0xff]
    %v62 = vld [vmem:[#allocation2 + $0x8] sm:$0xff]
    %v63 = vld [vmem:[#allocation2 + $0x10] sm:$0xff]
    %v64 = vld [vmem:[#allocation2 + $0x18] sm:$0xff]
    %v65 = vld [vmem:[#allocation2 + $0x20] sm:$0xff]
    %v66 = vld [vmem:[#allocation2 + $0x28] sm:$0xff]
    %v67 = vld [vmem:[#allocation2 + $0x30] sm:$0xff]
    %v68 = vld [vmem:[#allocation2 + $0x38] sm:$0xff]
    %v69 = vld [vmem:[#allocation2 + $0x40] sm:$0xff]
    %v70 = vld [vmem:[#allocation2 + $0x48] sm:$0xff]
    %v71 = vld [vmem:[#allocation2 + $0x50] sm:$0xff]
    %v72 = vld [vmem:[#allocation2 + $0x58] sm:$0xff]
    %v73 = vld [vmem:[#allocation2 + $0x60] sm:$0xff]
    %v74 = vld [vmem:[#allocation2 + $0x68] sm:$0xff]
    %v75 = vld [vmem:[#allocation2 + $0x70] sm:$0xff]
    %v76 = vld [vmem:[#allocation2 + $0x78] sm:$0xff]
    %v77 = vld [vmem:[#allocation2 + $0x80] sm:$0xff]
    %v78 = vld [vmem:[#allocation2 + $0x88] sm:$0xff]
    %v79 = vld [vmem:[#allocation2 + $0x90] sm:$0xff]
    %v80 = vld [vmem:[#allocation2 + $0x98] sm:$0xff]
    %v81 = vld [vmem:[#allocation2 + $0xa0] sm:$0xff]
    %v82 = vld [vmem:[#allocation2 + $0xa8] sm:$0xff]
    %v83 = vld [vmem:[#allocation2 + $0xb0] sm:$0xff]
    %v84 = vld [vmem:[#allocation2 + $0xb8] sm:$0xff]
    %v85 = vld [vmem:[#allocation2 + $0xc0] sm:$0xff]
    %v86 = vld [vmem:[#allocation2 + $0xc8] sm:$0xff]
    %v87 = vld [vmem:[#allocation2 + $0xd0] sm:$0xff]
    %v88 = vld [vmem:[#allocation2 + $0xd8] sm:$0xff]
    %v89 = vld [vmem:[#allocation2 + $0xe0] sm:$0xff]
    %v90 = vld [vmem:[#allocation2 + $0xe8] sm:$0xff]
    %v91 = vld [vmem:[#allocation2 + $0xf0] sm:$0xff]
    %v92 = vld [vmem:[#allocation2 + $0xf8] sm:$0xff]
    %vm93 = vcmask 261120
    %v95 = vsel %vm93, %v61, 0
    %v98 = vsel %vm93, %v62, 0
    %v101 = vsel %vm93, %v63, 0
    %v104 = vsel %vm93, %v64, 0
    %v107 = vsel %vm93, %v65, 0
    %v110 = vsel %vm93, %v66, 0
    %v113 = vsel %vm93, %v67, 0
    %v116 = vsel %vm93, %v68, 0
    %v119 = vsel %vm93, %v69, 0
    %v122 = vsel %vm93, %v70, 0
    %v125 = vsel %vm93, %v71, 0
    %v128 = vsel %vm93, %v72, 0
    %v131 = vsel %vm93, %v73, 0
    %v134 = vsel %vm93, %v74, 0
    %v137 = vsel %vm93, %v75, 0
    %v140 = vsel %vm93, %v76, 0
    %v143 = vsel %vm93, %v77, 0
    %v146 = vsel %vm93, %v78, 0
    %v149 = vsel %vm93, %v79, 0
    %v152 = vsel %vm93, %v80, 0
    %v155 = vsel %vm93, %v81, 0
    %v158 = vsel %vm93, %v82, 0
    %v161 = vsel %vm93, %v83, 0
    %v164 = vsel %vm93, %v84, 0
    %v167 = vsel %vm93, %v85, 0
    %v170 = vsel %vm93, %v86, 0
    %v173 = vsel %vm93, %v87, 0
    %v176 = vsel %vm93, %v88, 0
    %v179 = vsel %vm93, %v89, 0
    %v182 = vsel %vm93, %v90, 0
    %v185 = vsel %vm93, %v91, 0
    %v188 = vsel %vm93, %v92, 0
    %v191 = vsel %vm93, %v55, 0
    %v194 = vsel %vm93, %v56, 0
    %v197 = vsel %vm93, %v57, 0
    %v200 = vsel %vm93, %v58, 0
    %202 = vmatprep.subr.mxu0 0.0
    %203 = vmatpush1.xpose.msra.mxu0 %v191
    %204 = vmatprep.subr.mxu0 0.0
    %205 = vmatpush1.xpose.msra.mxu0 %v194
    %206 = vmatprep.subr.mxu0 0.0
    %207 = vmatpush1.xpose.msra.mxu0 %v197
    %208 = vmatprep.subr.mxu0 0.0
    %209 = vmatpush1.xpose.msra.mxu0 %v200
    %210 = vmatprep.subr.mxu0 0.0
    %211 = vmatpush1.xpose.msra.mxu0 0.0
    %212 = vmatprep.subr.mxu0 0.0
    %213 = vmatpush1.xpose.msra.mxu0 0.0
    %214 = vmatprep.subr.mxu0 0.0
    %215 = vmatpush1.xpose.msra.mxu0 0.0
    %216 = vmatprep.subr.mxu0 0.0
    %217 = vmatpush1.xpose.msra.mxu0 0.0
    %218 = vmatprep.subr.mxu0 0.0
    %219 = vmatpush1.xpose.msra.mxu0 0.0
    %220 = vmatprep.subr.mxu0 0.0
    %221 = vmatpush1.xpose.msra.mxu0 0.0
    %222 = vmatprep.subr.mxu0 0.0
    %223 = vmatpush1.xpose.msra.mxu0 0.0
    %224 = vmatprep.subr.mxu0 0.0
    %225 = vmatpush1.xpose.msra.mxu0 0.0
    %226 = vmatprep.subr.mxu0 0.0
    %227 = vmatpush1.xpose.msra.mxu0 0.0
    %228 = vmatprep.subr.mxu0 0.0
    %229 = vmatpush1.xpose.msra.mxu0 0.0
    %230 = vmatprep.subr.mxu0 0.0
    %231 = vmatpush1.xpose.msra.mxu0 0.0
    %232 = vmatprep.subr.mxu0 0.0
    %233 = vmatpush1.xpose.msra.mxu0 0.0
    %234 = vmatprep.subr.mxu0 0.0
    %235 = vmatpush1.xpose.msra.mxu0 0.0
    %236 = vmatprep.subr.mxu0 0.0
    %237 = vmatpush1.xpose.msra.mxu0 0.0
    %238 = vmatprep.subr.mxu0 0.0
    %239 = vmatpush1.xpose.msra.mxu0 0.0
    %240 = vmatprep.subr.mxu0 0.0
    %241 = vmatpush1.xpose.msra.mxu0 0.0
    %242 = vmatprep.subr.mxu0 0.0
    %243 = vmatpush1.xpose.msra.mxu0 0.0
    %244 = vmatprep.subr.mxu0 0.0
    %245 = vmatpush1.xpose.msra.mxu0 0.0
    %246 = vmatprep.subr.mxu0 0.0
    %247 = vmatpush1.xpose.msra.mxu0 0.0
    %248 = vmatprep.subr.mxu0 0.0
    %249 = vmatpush1.xpose.msra.mxu0 0.0
    %250 = vmatprep.subr.mxu0 0.0
    %251 = vmatpush1.xpose.msra.mxu0 0.0
    %252 = vmatprep.subr.mxu0 0.0
    %253 = vmatpush1.xpose.msra.mxu0 0.0
    %254 = vmatprep.subr.mxu0 0.0
    %255 = vmatpush1.xpose.msra.mxu0 0.0
    %256 = vmatprep.subr.mxu0 0.0
    %257 = vmatpush1.xpose.msra.mxu0 0.0
    %258 = vmatprep.subr.mxu0 0.0
    %259 = vmatpush1.xpose.msra.mxu0 0.0
    %260 = vmatprep.subr.mxu0 0.0
    %261 = vmatpush1.xpose.msra.mxu0 0.0
    %262 = vmatprep.subr.mxu0 0.0
    %263 = vmatpush1.xpose.msra.mxu0 0.0
    %264 = vmatprep.subr.mxu0 0.0
    %265 = vmatpush1.xpose.msra.mxu0 0.0
    %266 = vmatprep.mubr.f32.mxu0 0.0
    %267 = vmatmul.mubr.f32.gmra.mrb[0].mxu0 %v95
    %v268 = vpop.f32.mrb[0].mxu0
    %v269 = vadd.f32 0.0, %v268
    %v270 = vpop.f32.mrb[0].mxu0
    %271 = vmatprep.mubr.f32.mxu0 0.0
    %272 = vmatmul.mubr.f32.gmra.mrb[0].mxu0 %v98
    %v273 = vpop.f32.mrb[0].mxu0
    %v274 = vadd.f32 0.0, %v273
    %v275 = vpop.f32.mrb[0].mxu0
    %276 = vmatprep.mubr.f32.mxu0 0.0
    %277 = vmatmul.mubr.f32.gmra.mrb[0].mxu0 %v101
    %v278 = vpop.f32.mrb[0].mxu0
    %v279 = vadd.f32 0.0, %v278
    %v280 = vpop.f32.mrb[0].mxu0
    %281 = vmatprep.mubr.f32.mxu0 0.0
    %282 = vmatmul.mubr.f32.gmra.mrb[0].mxu0 %v104
    %v283 = vpop.f32.mrb[0].mxu0
    %v284 = vadd.f32 0.0, %v283
    %v285 = vpop.f32.mrb[0].mxu0
    %286 = vmatprep.mubr.f32.mxu0 0.0
    %287 = vmatmul.mubr.f32.gmra.mrb[0].mxu0 %v107
    %v288 = vpop.f32.mrb[0].mxu0
    %v289 = vadd.f32 0.0, %v288
    %v290 = vpop.f32.mrb[0].mxu0
    %291 = vmatprep.mubr.f32.mxu0 0.0
    %292 = vmatmul.mubr.f32.gmra.mrb[0].mxu0 %v110
    %v293 = vpop.f32.mrb[0].mxu0
    %v294 = vadd.f32 0.0, %v293
    %v295 = vpop.f32.mrb[0].mxu0
    %296 = vmatprep.mubr.f32.mxu0 0.0
    %297 = vmatmul.mubr.f32.gmra.mrb[0].mxu0 %v113
    %v298 = vpop.f32.mrb[0].mxu0
    %v299 = vadd.f32 0.0, %v298
    %v300 = vpop.f32.mrb[0].mxu0
    %301 = vmatprep.mubr.f32.mxu0 0.0
    %302 = vmatmul.mubr.f32.gmra.mrb[0].mxu0 %v116
    %v303 = vpop.f32.mrb[0].mxu0
    %v304 = vadd.f32 0.0, %v303
    %v305 = vpop.f32.mrb[0].mxu0
    %306 = vmatprep.mubr.f32.mxu0 0.0
    %307 = vmatmul.mubr.f32.gmra.mrb[0].mxu0 %v119
    %v308 = vpop.f32.mrb[0].mxu0
    %v309 = vadd.f32 0.0, %v308
    %v310 = vpop.f32.mrb[0].mxu0
    %311 = vmatprep.mubr.f32.mxu0 0.0
    %312 = vmatmul.mubr.f32.gmra.mrb[0].mxu0 %v122
    %v313 = vpop.f32.mrb[0].mxu0
    %v314 = vadd.f32 0.0, %v313
    %v315 = vpop.f32.mrb[0].mxu0
    %316 = vmatprep.mubr.f32.mxu0 0.0
    %317 = vmatmul.mubr.f32.gmra.mrb[0].mxu0 %v125
    %v318 = vpop.f32.mrb[0].mxu0
    %v319 = vadd.f32 0.0, %v318
    %v320 = vpop.f32.mrb[0].mxu0
    %321 = vmatprep.mubr.f32.mxu0 0.0
    %322 = vmatmul.mubr.f32.gmra.mrb[0].mxu0 %v128
    %v323 = vpop.f32.mrb[0].mxu0
    %v324 = vadd.f32 0.0, %v323
    %v325 = vpop.f32.mrb[0].mxu0
    %326 = vmatprep.mubr.f32.mxu0 0.0
    %327 = vmatmul.mubr.f32.gmra.mrb[0].mxu0 %v131
    %v328 = vpop.f32.mrb[0].mxu0
    %v329 = vadd.f32 0.0, %v328
    %v330 = vpop.f32.mrb[0].mxu0
    %331 = vmatprep.mubr.f32.mxu0 0.0
    %332 = vmatmul.mubr.f32.gmra.mrb[0].mxu0 %v134
    %v333 = vpop.f32.mrb[0].mxu0
    %v334 = vadd.f32 0.0, %v333
    %v335 = vpop.f32.mrb[0].mxu0
    %336 = vmatprep.mubr.f32.mxu0 0.0
    %337 = vmatmul.mubr.f32.gmra.mrb[0].mxu0 %v137
    %v338 = vpop.f32.mrb[0].mxu0
    %v339 = vadd.f32 0.0, %v338
    %v340 = vpop.f32.mrb[0].mxu0
    %341 = vmatprep.mubr.f32.mxu0 0.0
    %342 = vmatmul.mubr.f32.gmra.mrb[0].mxu0 %v140
    %v343 = vpop.f32.mrb[0].mxu0
    %v344 = vadd.f32 0.0, %v343
    %v345 = vpop.f32.mrb[0].mxu0
    %346 = vmatprep.mubr.f32.mxu0 0.0
    %347 = vmatmul.mubr.f32.gmra.mrb[0].mxu0 %v143
    %v348 = vpop.f32.mrb[0].mxu0
    %v349 = vadd.f32 0.0, %v348
    %v350 = vpop.f32.mrb[0].mxu0
    %351 = vmatprep.mubr.f32.mxu0 0.0
    %352 = vmatmul.mubr.f32.gmra.mrb[0].mxu0 %v146
    %v353 = vpop.f32.mrb[0].mxu0
    %v354 = vadd.f32 0.0, %v353
    %v355 = vpop.f32.mrb[0].mxu0
    %356 = vmatprep.mubr.f32.mxu0 0.0
    %357 = vmatmul.mubr.f32.gmra.mrb[0].mxu0 %v149
    %v358 = vpop.f32.mrb[0].mxu0
    %v359 = vadd.f32 0.0, %v358
    %v360 = vpop.f32.mrb[0].mxu0
    %361 = vmatprep.mubr.f32.mxu0 0.0
    %362 = vmatmul.mubr.f32.gmra.mrb[0].mxu0 %v152
    %v363 = vpop.f32.mrb[0].mxu0
    %v364 = vadd.f32 0.0, %v363
    %v365 = vpop.f32.mrb[0].mxu0
    %366 = vmatprep.mubr.f32.mxu0 0.0
    %367 = vmatmul.mubr.f32.gmra.mrb[0].mxu0 %v155
    %v368 = vpop.f32.mrb[0].mxu0
    %v369 = vadd.f32 0.0, %v368
    %v370 = vpop.f32.mrb[0].mxu0
    %371 = vmatprep.mubr.f32.mxu0 0.0
    %372 = vmatmul.mubr.f32.gmra.mrb[0].mxu0 %v158
    %v373 = vpop.f32.mrb[0].mxu0
    %v374 = vadd.f32 0.0, %v373
    %v375 = vpop.f32.mrb[0].mxu0
    %376 = vmatprep.mubr.f32.mxu0 0.0
    %377 = vmatmul.mubr.f32.gmra.mrb[0].mxu0 %v161
    %v378 = vpop.f32.mrb[0].mxu0
    %v379 = vadd.f32 0.0, %v378
    %v380 = vpop.f32.mrb[0].mxu0
    %381 = vmatprep.mubr.f32.mxu0 0.0
    %382 = vmatmul.mubr.f32.gmra.mrb[0].mxu0 %v164
    %v383 = vpop.f32.mrb[0].mxu0
    %v384 = vadd.f32 0.0, %v383
    %v385 = vpop.f32.mrb[0].mxu0
    %386 = vmatprep.mubr.f32.mxu0 0.0
    %387 = vmatmul.mubr.f32.gmra.mrb[0].mxu0 %v167
    %v388 = vpop.f32.mrb[0].mxu0
    %v389 = vadd.f32 0.0, %v388
    %v390 = vpop.f32.mrb[0].mxu0
    %391 = vmatprep.mubr.f32.mxu0 0.0
    %392 = vmatmul.mubr.f32.gmra.mrb[0].mxu0 %v170
    %v393 = vpop.f32.mrb[0].mxu0
    %v394 = vadd.f32 0.0, %v393
    %v395 = vpop.f32.mrb[0].mxu0
    %396 = vmatprep.mubr.f32.mxu0 0.0
    %397 = vmatmul.mubr.f32.gmra.mrb[0].mxu0 %v173
    %v398 = vpop.f32.mrb[0].mxu0
    %v399 = vadd.f32 0.0, %v398
    %v400 = vpop.f32.mrb[0].mxu0
    %401 = vmatprep.mubr.f32.mxu0 0.0
    %402 = vmatmul.mubr.f32.gmra.mrb[0].mxu0 %v176
    %v403 = vpop.f32.mrb[0].mxu0
    %v404 = vadd.f32 0.0, %v403
    %v405 = vpop.f32.mrb[0].mxu0
    %406 = vmatprep.mubr.f32.mxu0 0.0
    %407 = vmatmul.mubr.f32.gmra.mrb[0].mxu0 %v179
    %v408 = vpop.f32.mrb[0].mxu0
    %v409 = vadd.f32 0.0, %v408
    %v410 = vpop.f32.mrb[0].mxu0
    %411 = vmatprep.mubr.f32.mxu0 0.0
    %412 = vmatmul.mubr.f32.gmra.mrb[0].mxu0 %v182
    %v413 = vpop.f32.mrb[0].mxu0
    %v414 = vadd.f32 0.0, %v413
    %v415 = vpop.f32.mrb[0].mxu0
    %416 = vmatprep.mubr.f32.mxu0 0.0
    %417 = vmatmul.mubr.f32.gmra.mrb[0].mxu0 %v185
    %v418 = vpop.f32.mrb[0].mxu0
    %v419 = vadd.f32 0.0, %v418
    %v420 = vpop.f32.mrb[0].mxu0
    %421 = vmatprep.mubr.f32.mxu0 0.0
    %422 = vmatmul.mubr.f32.gmra.mrb[0].mxu0 %v188
    %v423 = vpop.f32.mrb[0].mxu0
    %v424 = vadd.f32 0.0, %v423
    %v425 = vpop.f32.mrb[0].mxu0
    %426 = vdwg.mxu0
    %427 = vxpose.xlu0.b32.start [1/16] %v269, 128
    %428 = vxpose.xlu0.b32.cont [2/16] %v274, 128
    %429 = vxpose.xlu0.b32.cont [3/16] 0.0, 128
    %430 = vxpose.xlu0.b32.cont [4/16] 0.0, 128
    %431 = vxpose.xlu0.b32.cont [5/16] 0.0, 128
    %432 = vxpose.xlu0.b32.cont [6/16] 0.0, 128
    %433 = vxpose.xlu0.b32.cont [7/16] 0.0, 128
    %434 = vxpose.xlu0.b32.cont [8/16] 0.0, 128
    %435 = vxpose.xlu0.b32.cont [9/16] 0.0, 128
    %436 = vxpose.xlu0.b32.cont [10/16] 0.0, 128
    %437 = vxpose.xlu0.b32.cont [11/16] 0.0, 128
    %438 = vxpose.xlu0.b32.cont [12/16] 0.0, 128
    %439 = vxpose.xlu0.b32.cont [13/16] 0.0, 128
    %440 = vxpose.xlu0.b32.cont [14/16] 0.0, 128
    %441 = vxpose.xlu0.b32.cont [15/16] 0.0, 128
    %442 = vxpose.xlu0.b32.end [16/16] 0.0, 128
    %v443 = vpop.trf.xlu0
    %v444 = vpop.trf.xlu0
    %v445 = vpop.trf.xlu0
    %v446 = vpop.trf.xlu0
    %v447 = vpop.trf.xlu0
    %v448 = vpop.trf.xlu0
    %v449 = vpop.trf.xlu0
    %v450 = vpop.trf.xlu0
    %v451 = vpop.trf.xlu0
    %v452 = vpop.trf.xlu0
    %v453 = vpop.trf.xlu0
    %v454 = vpop.trf.xlu0
    %v455 = vpop.trf.xlu0
    %v456 = vpop.trf.xlu0
    %v457 = vpop.trf.xlu0
    %v458 = vpop.trf.xlu0
    %vm459 = vcmask 130048
    %v461 = vsel %vm459, %v443, 0
    %v464 = vsel %vm459, %v444, 0
    %v467 = vsel %vm459, %v445, 0
    %v470 = vsel %vm459, %v446, 0
    %472 = vmatprep.subr.mxu0 0.0
    %473 = vmatpush1.msra.mxu0 %v59
    %474 = vmatprep.subr.mxu0 0.0
    %475 = vmatpush1.msra.mxu0 %v60
    %476 = vmatprep.subr.mxu0 0.0
    %477 = vmatpush1.msra.mxu0 0.0
    %478 = vmatprep.subr.mxu0 0.0
    %479 = vmatpush1.msra.mxu0 0.0
    %480 = vmatprep.subr.mxu0 0.0
    %481 = vmatpush1.msra.mxu0 0.0
    %482 = vmatprep.subr.mxu0 0.0
    %483 = vmatpush1.msra.mxu0 0.0
    %484 = vmatprep.subr.mxu0 0.0
    %485 = vmatpush1.msra.mxu0 0.0
    %486 = vmatprep.subr.mxu0 0.0
    %487 = vmatpush1.msra.mxu0 0.0
    %488 = vmatprep.subr.mxu0 0.0
    %489 = vmatpush1.msra.mxu0 0.0
    %490 = vmatprep.subr.mxu0 0.0
    %491 = vmatpush1.msra.mxu0 0.0
    %492 = vmatprep.subr.mxu0 0.0
    %493 = vmatpush1.msra.mxu0 0.0
    %494 = vmatprep.subr.mxu0 0.0
    %495 = vmatpush1.msra.mxu0 0.0
    %496 = vmatprep.subr.mxu0 0.0
    %497 = vmatpush1.msra.mxu0 0.0
    %498 = vmatprep.subr.mxu0 0.0
    %499 = vmatpush1.msra.mxu0 0.0
    %500 = vmatprep.subr.mxu0 0.0
    %501 = vmatpush1.msra.mxu0 0.0
    %502 = vmatprep.subr.mxu0 0.0
    %503 = vmatpush1.msra.mxu0 0.0
    %504 = vmatprep.subr.mxu0 0.0
    %505 = vmatpush1.msra.mxu0 0.0
    %506 = vmatprep.subr.mxu0 0.0
    %507 = vmatpush1.msra.mxu0 0.0
    %508 = vmatprep.subr.mxu0 0.0
    %509 = vmatpush1.msra.mxu0 0.0
    %510 = vmatprep.subr.mxu0 0.0
    %511 = vmatpush1.msra.mxu0 0.0
    %512 = vmatprep.subr.mxu0 0.0
    %513 = vmatpush1.msra.mxu0 0.0
    %514 = vmatprep.subr.mxu0 0.0
    %515 = vmatpush1.msra.mxu0 0.0
    %516 = vmatprep.subr.mxu0 0.0
    %517 = vmatpush1.msra.mxu0 0.0
    %518 = vmatprep.subr.mxu0 0.0
    %519 = vmatpush1.msra.mxu0 0.0
    %520 = vmatprep.subr.mxu0 0.0
    %521 = vmatpush1.msra.mxu0 0.0
    %522 = vmatprep.subr.mxu0 0.0
    %523 = vmatpush1.msra.mxu0 0.0
    %524 = vmatprep.subr.mxu0 0.0
    %525 = vmatpush1.msra.mxu0 0.0
    %526 = vmatprep.subr.mxu0 0.0
    %527 = vmatpush1.msra.mxu0 0.0
    %528 = vmatprep.subr.mxu0 0.0
    %529 = vmatpush1.msra.mxu0 0.0
    %530 = vmatprep.subr.mxu0 0.0
    %531 = vmatpush1.msra.mxu0 0.0
    %532 = vmatprep.subr.mxu0 0.0
    %533 = vmatpush1.msra.mxu0 0.0
    %534 = vmatprep.subr.mxu0 0.0
    %535 = vmatpush1.msra.mxu0 0.0
    %536 = vmatprep.mubr.f32.mxu0 0.0
    %537 = vmatmul.mubr.f32.gmra.mrb[0].mxu0 %v461
    %v538 = vpop.f32.mrb[0].mxu0
    %v539 = vadd.f32 0.0, %v538
    %v540 = vpop.f32.mrb[0].mxu0
    %541 = vmatprep.mubr.f32.mxu0 0.0
    %542 = vmatmul.mubr.f32.gmra.mrb[0].mxu0 %v464
    %v543 = vpop.f32.mrb[0].mxu0
    %v544 = vadd.f32 0.0, %v543
    %v545 = vpop.f32.mrb[0].mxu0
    %546 = vmatprep.mubr.f32.mxu0 0.0
    %547 = vmatmul.mubr.f32.gmra.mrb[0].mxu0 %v467
    %v548 = vpop.f32.mrb[0].mxu0
    %v549 = vadd.f32 0.0, %v548
    %v550 = vpop.f32.mrb[0].mxu0
    %551 = vmatprep.mubr.f32.mxu0 0.0
    %552 = vmatmul.mubr.f32.gmra.mrb[0].mxu0 %v470
    %v553 = vpop.f32.mrb[0].mxu0
    %v554 = vadd.f32 0.0, %v553
    %v555 = vpop.f32.mrb[0].mxu0
    %556 = vdwg.mxu0
    %557 = vst.msk [vmem:[%s3] sm:$0xff] %vm459, %v539
    %558 = vst.msk [vmem:[%s3 + $0x8] sm:$0xff] %vm459, %v544
    %559 = vst.msk [vmem:[%s3 + $0x10] sm:$0xff] %vm459, %v549
    %560 = vst.msk [vmem:[%s3 + $0x18] sm:$0xff] %vm459, %v554
    %561 = vxpose.xlu0.b32.start [1/16] %v279, 128
    %562 = vxpose.xlu0.b32.cont [2/16] %v284, 128
    %563 = vxpose.xlu0.b32.cont [3/16] 0.0, 128
    %564 = vxpose.xlu0.b32.cont [4/16] 0.0, 128
    %565 = vxpose.xlu0.b32.cont [5/16] 0.0, 128
    %566 = vxpose.xlu0.b32.cont [6/16] 0.0, 128
    %567 = vxpose.xlu0.b32.cont [7/16] 0.0, 128
    %568 = vxpose.xlu0.b32.cont [8/16] 0.0, 128
    %569 = vxpose.xlu0.b32.cont [9/16] 0.0, 128
    %570 = vxpose.xlu0.b32.cont [10/16] 0.0, 128
    %571 = vxpose.xlu0.b32.cont [11/16] 0.0, 128
    %572 = vxpose.xlu0.b32.cont [12/16] 0.0, 128
    %573 = vxpose.xlu0.b32.cont [13/16] 0.0, 128
    %574 = vxpose.xlu0.b32.cont [14/16] 0.0, 128
    %575 = vxpose.xlu0.b32.cont [15/16] 0.0, 128
    %576 = vxpose.xlu0.b32.end [16/16] 0.0, 128
    %v577 = vpop.trf.xlu0
    %v578 = vpop.trf.xlu0
    %v579 = vpop.trf.xlu0
    %v580 = vpop.trf.xlu0
    %v581 = vpop.trf.xlu0
    %v582 = vpop.trf.xlu0
    %v583 = vpop.trf.xlu0
    %v584 = vpop.trf.xlu0
    %v585 = vpop.trf.xlu0
    %v586 = vpop.trf.xlu0
    %v587 = vpop.trf.xlu0
    %v588 = vpop.trf.xlu0
    %v589 = vpop.trf.xlu0
    %v590 = vpop.trf.xlu0
    %v591 = vpop.trf.xlu0
    %v592 = vpop.trf.xlu0
    %v594 = vsel %vm459, %v577, 0
    %v597 = vsel %vm459, %v578, 0
    %v600 = vsel %vm459, %v579, 0
    %v603 = vsel %vm459, %v580, 0
    %605 = vmatprep.subr.mxu0 0.0
    %606 = vmatpush1.msra.mxu0 %v59
    %607 = vmatprep.subr.mxu0 0.0
    %608 = vmatpush1.msra.mxu0 %v60
    %609 = vmatprep.subr.mxu0 0.0
    %610 = vmatpush1.msra.mxu0 0.0
    %611 = vmatprep.subr.mxu0 0.0
    %612 = vmatpush1.msra.mxu0 0.0
    %613 = vmatprep.subr.mxu0 0.0
    %614 = vmatpush1.msra.mxu0 0.0
    %615 = vmatprep.subr.mxu0 0.0
    %616 = vmatpush1.msra.mxu0 0.0
    %617 = vmatprep.subr.mxu0 0.0
    %618 = vmatpush1.msra.mxu0 0.0
    %619 = vmatprep.subr.mxu0 0.0
    %620 = vmatpush1.msra.mxu0 0.0
    %621 = vmatprep.subr.mxu0 0.0
    %622 = vmatpush1.msra.mxu0 0.0
    %623 = vmatprep.subr.mxu0 0.0
    %624 = vmatpush1.msra.mxu0 0.0
    %625 = vmatprep.subr.mxu0 0.0
    %626 = vmatpush1.msra.mxu0 0.0
    %627 = vmatprep.subr.mxu0 0.0
    %628 = vmatpush1.msra.mxu0 0.0
    %629 = vmatprep.subr.mxu0 0.0
    %630 = vmatpush1.msra.mxu0 0.0
    %631 = vmatprep.subr.mxu0 0.0
    %632 = vmatpush1.msra.mxu0 0.0
    %633 = vmatprep.subr.mxu0 0.0
    %634 = vmatpush1.msra.mxu0 0.0
    %635 = vmatprep.subr.mxu0 0.0
    %636 = vmatpush1.msra.mxu0 0.0
    %637 = vmatprep.subr.mxu0 0.0
    %638 = vmatpush1.msra.mxu0 0.0
    %639 = vmatprep.subr.mxu0 0.0
    %640 = vmatpush1.msra.mxu0 0.0
    %641 = vmatprep.subr.mxu0 0.0
    %642 = vmatpush1.msra.mxu0 0.0
    %643 = vmatprep.subr.mxu0 0.0
    %644 = vmatpush1.msra.mxu0 0.0
    %645 = vmatprep.subr.mxu0 0.0
    %646 = vmatpush1.msra.mxu0 0.0
    %647 = vmatprep.subr.mxu0 0.0
    %648 = vmatpush1.msra.mxu0 0.0
    %649 = vmatprep.subr.mxu0 0.0
    %650 = vmatpush1.msra.mxu0 0.0
    %651 = vmatprep.subr.mxu0 0.0
    %652 = vmatpush1.msra.mxu0 0.0
    %653 = vmatprep.subr.mxu0 0.0
    %654 = vmatpush1.msra.mxu0 0.0
    %655 = vmatprep.subr.mxu0 0.0
    %656 = vmatpush1.msra.mxu0 0.0
    %657 = vmatprep.subr.mxu0 0.0
    %658 = vmatpush1.msra.mxu0 0.0
    %659 = vmatprep.subr.mxu0 0.0
    %660 = vmatpush1.msra.mxu0 0.0
    %661 = vmatprep.subr.mxu0 0.0
    %662 = vmatpush1.msra.mxu0 0.0
    %663 = vmatprep.subr.mxu0 0.0
    %664 = vmatpush1.msra.mxu0 0.0
    %665 = vmatprep.subr.mxu0 0.0
    %666 = vmatpush1.msra.mxu0 0.0
    %667 = vmatprep.subr.mxu0 0.0
    %668 = vmatpush1.msra.mxu0 0.0
    %669 = vmatprep.mubr.f32.mxu0 0.0
    %670 = vmatmul.mubr.f32.gmra.mrb[0].mxu0 %v594
    %v671 = vpop.f32.mrb[0].mxu0
    %v672 = vadd.f32 0.0, %v671
    %v673 = vpop.f32.mrb[0].mxu0
    %674 = vmatprep.mubr.f32.mxu0 0.0
    %675 = vmatmul.mubr.f32.gmra.mrb[0].mxu0 %v597
    %v676 = vpop.f32.mrb[0].mxu0
    %v677 = vadd.f32 0.0, %v676
    %v678 = vpop.f32.mrb[0].mxu0
    %679 = vmatprep.mubr.f32.mxu0 0.0
    %680 = vmatmul.mubr.f32.gmra.mrb[0].mxu0 %v600
    %v681 = vpop.f32.mrb[0].mxu0
    %v682 = vadd.f32 0.0, %v681
    %v683 = vpop.f32.mrb[0].mxu0
    %684 = vmatprep.mubr.f32.mxu0 0.0
    %685 = vmatmul.mubr.f32.gmra.mrb[0].mxu0 %v603
    %v686 = vpop.f32.mrb[0].mxu0
    %v687 = vadd.f32 0.0, %v686
    %v688 = vpop.f32.mrb[0].mxu0
    %689 = vdwg.mxu0
    %s690 = scalar_lea.vmem %s3, 32
    %691 = vst.msk [vmem:[%s690] sm:$0xff] %vm459, %v672
    %692 = vst.msk [vmem:[%s690 + $0x8] sm:$0xff] %vm459, %v677
    %693 = vst.msk [vmem:[%s690 + $0x10] sm:$0xff] %vm459, %v682
    %694 = vst.msk [vmem:[%s690 + $0x18] sm:$0xff] %vm459, %v687
    %695 = vxpose.xlu0.b32.start [1/16] %v289, 128
    %696 = vxpose.xlu0.b32.cont [2/16] %v294, 128
    %697 = vxpose.xlu0.b32.cont [3/16] 0.0, 128
    %698 = vxpose.xlu0.b32.cont [4/16] 0.0, 128
    %699 = vxpose.xlu0.b32.cont [5/16] 0.0, 128
    %700 = vxpose.xlu0.b32.cont [6/16] 0.0, 128
    %701 = vxpose.xlu0.b32.cont [7/16] 0.0, 128
    %702 = vxpose.xlu0.b32.cont [8/16] 0.0, 128
    %703 = vxpose.xlu0.b32.cont [9/16] 0.0, 128
    %704 = vxpose.xlu0.b32.cont [10/16] 0.0, 128
    %705 = vxpose.xlu0.b32.cont [11/16] 0.0, 128
    %706 = vxpose.xlu0.b32.cont [12/16] 0.0, 128
    %707 = vxpose.xlu0.b32.cont [13/16] 0.0, 128
    %708 = vxpose.xlu0.b32.cont [14/16] 0.0, 128
    %709 = vxpose.xlu0.b32.cont [15/16] 0.0, 128
    %710 = vxpose.xlu0.b32.end [16/16] 0.0, 128
    %v711 = vpop.trf.xlu0
    %v712 = vpop.trf.xlu0
    %v713 = vpop.trf.xlu0
    %v714 = vpop.trf.xlu0
    %v715 = vpop.trf.xlu0
    %v716 = vpop.trf.xlu0
    %v717 = vpop.trf.xlu0
    %v718 = vpop.trf.xlu0
    %v719 = vpop.trf.xlu0
    %v720 = vpop.trf.xlu0
    %v721 = vpop.trf.xlu0
    %v722 = vpop.trf.xlu0
    %v723 = vpop.trf.xlu0
    %v724 = vpop.trf.xlu0
    %v725 = vpop.trf.xlu0
    %v726 = vpop.trf.xlu0
    %v728 = vsel %vm459, %v711, 0
    %v731 = vsel %vm459, %v712, 0
    %v734 = vsel %vm459, %v713, 0
    %v737 = vsel %vm459, %v714, 0
    %739 = vmatprep.subr.mxu0 0.0
    %740 = vmatpush1.msra.mxu0 %v59
    %741 = vmatprep.subr.mxu0 0.0
    %742 = vmatpush1.msra.mxu0 %v60
    %743 = vmatprep.subr.mxu0 0.0
    %744 = vmatpush1.msra.mxu0 0.0
    %745 = vmatprep.subr.mxu0 0.0
    %746 = vmatpush1.msra.mxu0 0.0
    %747 = vmatprep.subr.mxu0 0.0
    %748 = vmatpush1.msra.mxu0 0.0
    %749 = vmatprep.subr.mxu0 0.0
    %750 = vmatpush1.msra.mxu0 0.0
    %751 = vmatprep.subr.mxu0 0.0
    %752 = vmatpush1.msra.mxu0 0.0
    %753 = vmatprep.subr.mxu0 0.0
    %754 = vmatpush1.msra.mxu0 0.0
    %755 = vmatprep.subr.mxu0 0.0
    %756 = vmatpush1.msra.mxu0 0.0
    %757 = vmatprep.subr.mxu0 0.0
    %758 = vmatpush1.msra.mxu0 0.0
    %759 = vmatprep.subr.mxu0 0.0
    %760 = vmatpush1.msra.mxu0 0.0
    %761 = vmatprep.subr.mxu0 0.0
    %762 = vmatpush1.msra.mxu0 0.0
    %763 = vmatprep.subr.mxu0 0.0
    %764 = vmatpush1.msra.mxu0 0.0
    %765 = vmatprep.subr.mxu0 0.0
    %766 = vmatpush1.msra.mxu0 0.0
    %767 = vmatprep.subr.mxu0 0.0
    %768 = vmatpush1.msra.mxu0 0.0
    %769 = vmatprep.subr.mxu0 0.0
    %770 = vmatpush1.msra.mxu0 0.0
    %771 = vmatprep.subr.mxu0 0.0
    %772 = vmatpush1.msra.mxu0 0.0
    %773 = vmatprep.subr.mxu0 0.0
    %774 = vmatpush1.msra.mxu0 0.0
    %775 = vmatprep.subr.mxu0 0.0
    %776 = vmatpush1.msra.mxu0 0.0
    %777 = vmatprep.subr.mxu0 0.0
    %778 = vmatpush1.msra.mxu0 0.0
    %779 = vmatprep.subr.mxu0 0.0
    %780 = vmatpush1.msra.mxu0 0.0
    %781 = vmatprep.subr.mxu0 0.0
    %782 = vmatpush1.msra.mxu0 0.0
    %783 = vmatprep.subr.mxu0 0.0
    %784 = vmatpush1.msra.mxu0 0.0
    %785 = vmatprep.subr.mxu0 0.0
    %786 = vmatpush1.msra.mxu0 0.0
    %787 = vmatprep.subr.mxu0 0.0
    %788 = vmatpush1.msra.mxu0 0.0
    %789 = vmatprep.subr.mxu0 0.0
    %790 = vmatpush1.msra.mxu0 0.0
    %791 = vmatprep.subr.mxu0 0.0
    %792 = vmatpush1.msra.mxu0 0.0
    %793 = vmatprep.subr.mxu0 0.0
    %794 = vmatpush1.msra.mxu0 0.0
    %795 = vmatprep.subr.mxu0 0.0
    %796 = vmatpush1.msra.mxu0 0.0
    %797 = vmatprep.subr.mxu0 0.0
    %798 = vmatpush1.msra.mxu0 0.0
    %799 = vmatprep.subr.mxu0 0.0
    %800 = vmatpush1.msra.mxu0 0.0
    %801 = vmatprep.subr.mxu0 0.0
    %802 = vmatpush1.msra.mxu0 0.0
    %803 = vmatprep.mubr.f32.mxu0 0.0
    %804 = vmatmul.mubr.f32.gmra.mrb[0].mxu0 %v728
    %v805 = vpop.f32.mrb[0].mxu0
    %v806 = vadd.f32 0.0, %v805
    %v807 = vpop.f32.mrb[0].mxu0
    %808 = vmatprep.mubr.f32.mxu0 0.0
    %809 = vmatmul.mubr.f32.gmra.mrb[0].mxu0 %v731
    %v810 = vpop.f32.mrb[0].mxu0
    %v811 = vadd.f32 0.0, %v810
    %v812 = vpop.f32.mrb[0].mxu0
    %813 = vmatprep.mubr.f32.mxu0 0.0
    %814 = vmatmul.mubr.f32.gmra.mrb[0].mxu0 %v734
    %v815 = vpop.f32.mrb[0].mxu0
    %v816 = vadd.f32 0.0, %v815
    %v817 = vpop.f32.mrb[0].mxu0
    %818 = vmatprep.mubr.f32.mxu0 0.0
    %819 = vmatmul.mubr.f32.gmra.mrb[0].mxu0 %v737
    %v820 = vpop.f32.mrb[0].mxu0
    %v821 = vadd.f32 0.0, %v820
    %v822 = vpop.f32.mrb[0].mxu0
    %823 = vdwg.mxu0
    %s824 = scalar_lea.vmem %s3, 64
    %825 = vst.msk [vmem:[%s824] sm:$0xff] %vm459, %v806
    %826 = vst.msk [vmem:[%s824 + $0x8] sm:$0xff] %vm459, %v811
    %827 = vst.msk [vmem:[%s824 + $0x10] sm:$0xff] %vm459, %v816
    %828 = vst.msk [vmem:[%s824 + $0x18] sm:$0xff] %vm459, %v821
    %829 = vxpose.xlu0.b32.start [1/16] %v299, 128
    %830 = vxpose.xlu0.b32.cont [2/16] %v304, 128
    %831 = vxpose.xlu0.b32.cont [3/16] 0.0, 128
    %832 = vxpose.xlu0.b32.cont [4/16] 0.0, 128
    %833 = vxpose.xlu0.b32.cont [5/16] 0.0, 128
    %834 = vxpose.xlu0.b32.cont [6/16] 0.0, 128
    %835 = vxpose.xlu0.b32.cont [7/16] 0.0, 128
    %836 = vxpose.xlu0.b32.cont [8/16] 0.0, 128
    %837 = vxpose.xlu0.b32.cont [9/16] 0.0, 128
    %838 = vxpose.xlu0.b32.cont [10/16] 0.0, 128
    %839 = vxpose.xlu0.b32.cont [11/16] 0.0, 128
    %840 = vxpose.xlu0.b32.cont [12/16] 0.0, 128
    %841 = vxpose.xlu0.b32.cont [13/16] 0.0, 128
    %842 = vxpose.xlu0.b32.cont [14/16] 0.0, 128
    %843 = vxpose.xlu0.b32.cont [15/16] 0.0, 128
    %844 = vxpose.xlu0.b32.end [16/16] 0.0, 128
    %v845 = vpop.trf.xlu0
    %v846 = vpop.trf.xlu0
    %v847 = vpop.trf.xlu0
    %v848 = vpop.trf.xlu0
    %v849 = vpop.trf.xlu0
    %v850 = vpop.trf.xlu0
    %v851 = vpop.trf.xlu0
    %v852 = vpop.trf.xlu0
    %v853 = vpop.trf.xlu0
    %v854 = vpop.trf.xlu0
    %v855 = vpop.trf.xlu0
    %v856 = vpop.trf.xlu0
    %v857 = vpop.trf.xlu0
    %v858 = vpop.trf.xlu0
    %v859 = vpop.trf.xlu0
    %v860 = vpop.trf.xlu0
    %v862 = vsel %vm459, %v845, 0
    %v865 = vsel %vm459, %v846, 0
    %v868 = vsel %vm459, %v847, 0
    %v871 = vsel %vm459, %v848, 0
    %873 = vmatprep.subr.mxu0 0.0
    %874 = vmatpush1.msra.mxu0 %v59
    %875 = vmatprep.subr.mxu0 0.0
    %876 = vmatpush1.msra.mxu0 %v60
    %877 = vmatprep.subr.mxu0 0.0
    %878 = vmatpush1.msra.mxu0 0.0
    %879 = vmatprep.subr.mxu0 0.0
    %880 = vmatpush1.msra.mxu0 0.0
    %881 = vmatprep.subr.mxu0 0.0
    %882 = vmatpush1.msra.mxu0 0.0
    %883 = vmatprep.subr.mxu0 0.0
    %884 = vmatpush1.msra.mxu0 0.0
    %885 = vmatprep.subr.mxu0 0.0
    %886 = vmatpush1.msra.mxu0 0.0
    %887 = vmatprep.subr.mxu0 0.0
    %888 = vmatpush1.msra.mxu0 0.0
    %889 = vmatprep.subr.mxu0 0.0
    %890 = vmatpush1.msra.mxu0 0.0
    %891 = vmatprep.subr.mxu0 0.0
    %892 = vmatpush1.msra.mxu0 0.0
    %893 = vmatprep.subr.mxu0 0.0
    %894 = vmatpush1.msra.mxu0 0.0
    %895 = vmatprep.subr.mxu0 0.0
    %896 = vmatpush1.msra.mxu0 0.0
    %897 = vmatprep.subr.mxu0 0.0
    %898 = vmatpush1.msra.mxu0 0.0
    %899 = vmatprep.subr.mxu0 0.0
    %900 = vmatpush1.msra.mxu0 0.0
    %901 = vmatprep.subr.mxu0 0.0
    %902 = vmatpush1.msra.mxu0 0.0
    %903 = vmatprep.subr.mxu0 0.0
    %904 = vmatpush1.msra.mxu0 0.0
    %905 = vmatprep.subr.mxu0 0.0
    %906 = vmatpush1.msra.mxu0 0.0
    %907 = vmatprep.subr.mxu0 0.0
    %908 = vmatpush1.msra.mxu0 0.0
    %909 = vmatprep.subr.mxu0 0.0
    %910 = vmatpush1.msra.mxu0 0.0
    %911 = vmatprep.subr.mxu0 0.0
    %912 = vmatpush1.msra.mxu0 0.0
    %913 = vmatprep.subr.mxu0 0.0
    %914 = vmatpush1.msra.mxu0 0.0
    %915 = vmatprep.subr.mxu0 0.0
    %916 = vmatpush1.msra.mxu0 0.0
    %917 = vmatprep.subr.mxu0 0.0
    %918 = vmatpush1.msra.mxu0 0.0
    %919 = vmatprep.subr.mxu0 0.0
    %920 = vmatpush1.msra.mxu0 0.0
    %921 = vmatprep.subr.mxu0 0.0
    %922 = vmatpush1.msra.mxu0 0.0
    %923 = vmatprep.subr.mxu0 0.0
    %924 = vmatpush1.msra.mxu0 0.0
    %925 = vmatprep.subr.mxu0 0.0
    %926 = vmatpush1.msra.mxu0 0.0
    %927 = vmatprep.subr.mxu0 0.0
    %928 = vmatpush1.msra.mxu0 0.0
    %929 = vmatprep.subr.mxu0 0.0
    %930 = vmatpush1.msra.mxu0 0.0
    %931 = vmatprep.subr.mxu0 0.0
    %932 = vmatpush1.msra.mxu0 0.0
    %933 = vmatprep.subr.mxu0 0.0
    %934 = vmatpush1.msra.mxu0 0.0
    %935 = vmatprep.subr.mxu0 0.0
    %936 = vmatpush1.msra.mxu0 0.0
    %937 = vmatprep.mubr.f32.mxu0 0.0
    %938 = vmatmul.mubr.f32.gmra.mrb[0].mxu0 %v862
    %v939 = vpop.f32.mrb[0].mxu0
    %v940 = vadd.f32 0.0, %v939
    %v941 = vpop.f32.mrb[0].mxu0
    %942 = vmatprep.mubr.f32.mxu0 0.0
    %943 = vmatmul.mubr.f32.gmra.mrb[0].mxu0 %v865
    %v944 = vpop.f32.mrb[0].mxu0
    %v945 = vadd.f32 0.0, %v944
    %v946 = vpop.f32.mrb[0].mxu0
    %947 = vmatprep.mubr.f32.mxu0 0.0
    %948 = vmatmul.mubr.f32.gmra.mrb[0].mxu0 %v868
    %v949 = vpop.f32.mrb[0].mxu0
    %v950 = vadd.f32 0.0, %v949
    %v951 = vpop.f32.mrb[0].mxu0
    %952 = vmatprep.mubr.f32.mxu0 0.0
    %953 = vmatmul.mubr.f32.gmra.mrb[0].mxu0 %v871
    %v954 = vpop.f32.mrb[0].mxu0
    %v955 = vadd.f32 0.0, %v954
    %v956 = vpop.f32.mrb[0].mxu0
    %957 = vdwg.mxu0
    %s958 = scalar_lea.vmem %s3, 96
    %959 = vst.msk [vmem:[%s958] sm:$0xff] %vm459, %v940
    %960 = vst.msk [vmem:[%s958 + $0x8] sm:$0xff] %vm459, %v945
    %961 = vst.msk [vmem:[%s958 + $0x10] sm:$0xff] %vm459, %v950
    %962 = vst.msk [vmem:[%s958 + $0x18] sm:$0xff] %vm459, %v955
    %963 = vxpose.xlu0.b32.start [1/16] %v309, 128
    %964 = vxpose.xlu0.b32.cont [2/16] %v314, 128
    %965 = vxpose.xlu0.b32.cont [3/16] 0.0, 128
    %966 = vxpose.xlu0.b32.cont [4/16] 0.0, 128
    %967 = vxpose.xlu0.b32.cont [5/16] 0.0, 128
    %968 = vxpose.xlu0.b32.cont [6/16] 0.0, 128
    %969 = vxpose.xlu0.b32.cont [7/16] 0.0, 128
    %970 = vxpose.xlu0.b32.cont [8/16] 0.0, 128
    %971 = vxpose.xlu0.b32.cont [9/16] 0.0, 128
    %972 = vxpose.xlu0.b32.cont [10/16] 0.0, 128
    %973 = vxpose.xlu0.b32.cont [11/16] 0.0, 128
    %974 = vxpose.xlu0.b32.cont [12/16] 0.0, 128
    %975 = vxpose.xlu0.b32.cont [13/16] 0.0, 128
    %976 = vxpose.xlu0.b32.cont [14/16] 0.0, 128
    %977 = vxpose.xlu0.b32.cont [15/16] 0.0, 128
    %978 = vxpose.xlu0.b32.end [16/16] 0.0, 128
    %v979 = vpop.trf.xlu0
    %v980 = vpop.trf.xlu0
    %v981 = vpop.trf.xlu0
    %v982 = vpop.trf.xlu0
    %v983 = vpop.trf.xlu0
    %v984 = vpop.trf.xlu0
    %v985 = vpop.trf.xlu0
    %v986 = vpop.trf.xlu0
    %v987 = vpop.trf.xlu0
    %v988 = vpop.trf.xlu0
    %v989 = vpop.trf.xlu0
    %v990 = vpop.trf.xlu0
    %v991 = vpop.trf.xlu0
    %v992 = vpop.trf.xlu0
    %v993 = vpop.trf.xlu0
    %v994 = vpop.trf.xlu0
    %v996 = vsel %vm459, %v979, 0
    %v999 = vsel %vm459, %v980, 0
    %v1002 = vsel %vm459, %v981, 0
    %v1005 = vsel %vm459, %v982, 0
    %1007 = vmatprep.subr.mxu0 0.0
    %1008 = vmatpush1.msra.mxu0 %v59
    %1009 = vmatprep.subr.mxu0 0.0
    %1010 = vmatpush1.msra.mxu0 %v60
    %1011 = vmatprep.subr.mxu0 0.0
    %1012 = vmatpush1.msra.mxu0 0.0
    %1013 = vmatprep.subr.mxu0 0.0
    %1014 = vmatpush1.msra.mxu0 0.0
    %1015 = vmatprep.subr.mxu0 0.0
    %1016 = vmatpush1.msra.mxu0 0.0
    %1017 = vmatprep.subr.mxu0 0.0
    %1018 = vmatpush1.msra.mxu0 0.0
    %1019 = vmatprep.subr.mxu0 0.0
    %1020 = vmatpush1.msra.mxu0 0.0
    %1021 = vmatprep.subr.mxu0 0.0
    %1022 = vmatpush1.msra.mxu0 0.0
    %1023 = vmatprep.subr.mxu0 0.0
    %1024 = vmatpush1.msra.mxu0 0.0
    %1025 = vmatprep.subr.mxu0 0.0
    %1026 = vmatpush1.msra.mxu0 0.0
    %1027 = vmatprep.subr.mxu0 0.0
    %1028 = vmatpush1.msra.mxu0 0.0
    %1029 = vmatprep.subr.mxu0 0.0
    %1030 = vmatpush1.msra.mxu0 0.0
    %1031 = vmatprep.subr.mxu0 0.0
    %1032 = vmatpush1.msra.mxu0 0.0
    %1033 = vmatprep.subr.mxu0 0.0
    %1034 = vmatpush1.msra.mxu0 0.0
    %1035 = vmatprep.subr.mxu0 0.0
    %1036 = vmatpush1.msra.mxu0 0.0
    %1037 = vmatprep.subr.mxu0 0.0
    %1038 = vmatpush1.msra.mxu0 0.0
    %1039 = vmatprep.subr.mxu0 0.0
    %1040 = vmatpush1.msra.mxu0 0.0
    %1041 = vmatprep.subr.mxu0 0.0
    %1042 = vmatpush1.msra.mxu0 0.0
    %1043 = vmatprep.subr.mxu0 0.0
    %1044 = vmatpush1.msra.mxu0 0.0
    %1045 = vmatprep.subr.mxu0 0.0
    %1046 = vmatpush1.msra.mxu0 0.0
    %1047 = vmatprep.subr.mxu0 0.0
    %1048 = vmatpush1.msra.mxu0 0.0
    %1049 = vmatprep.subr.mxu0 0.0
    %1050 = vmatpush1.msra.mxu0 0.0
    %1051 = vmatprep.subr.mxu0 0.0
    %1052 = vmatpush1.msra.mxu0 0.0
    %1053 = vmatprep.subr.mxu0 0.0
    %1054 = vmatpush1.msra.mxu0 0.0
    %1055 = vmatprep.subr.mxu0 0.0
    %1056 = vmatpush1.msra.mxu0 0.0
    %1057 = vmatprep.subr.mxu0 0.0
    %1058 = vmatpush1.msra.mxu0 0.0
    %1059 = vmatprep.subr.mxu0 0.0
    %1060 = vmatpush1.msra.mxu0 0.0
    %1061 = vmatprep.subr.mxu0 0.0
    %1062 = vmatpush1.msra.mxu0 0.0
    %1063 = vmatprep.subr.mxu0 0.0
    %1064 = vmatpush1.msra.mxu0 0.0
    %1065 = vmatprep.subr.mxu0 0.0
    %1066 = vmatpush1.msra.mxu0 0.0
    %1067 = vmatprep.subr.mxu0 0.0
    %1068 = vmatpush1.msra.mxu0 0.0
    %1069 = vmatprep.subr.mxu0 0.0
    %1070 = vmatpush1.msra.mxu0 0.0
    %1071 = vmatprep.mubr.f32.mxu0 0.0
    %1072 = vmatmul.mubr.f32.gmra.mrb[0].mxu0 %v996
    %v1073 = vpop.f32.mrb[0].mxu0
    %v1074 = vadd.f32 0.0, %v1073
    %v1075 = vpop.f32.mrb[0].mxu0
    %1076 = vmatprep.mubr.f32.mxu0 0.0
    %1077 = vmatmul.mubr.f32.gmra.mrb[0].mxu0 %v999
    %v1078 = vpop.f32.mrb[0].mxu0
    %v1079 = vadd.f32 0.0, %v1078
    %v1080 = vpop.f32.mrb[0].mxu0
    %1081 = vmatprep.mubr.f32.mxu0 0.0
    %1082 = vmatmul.mubr.f32.gmra.mrb[0].mxu0 %v1002
    %v1083 = vpop.f32.mrb[0].mxu0
    %v1084 = vadd.f32 0.0, %v1083
    %v1085 = vpop.f32.mrb[0].mxu0
    %1086 = vmatprep.mubr.f32.mxu0 0.0
    %1087 = vmatmul.mubr.f32.gmra.mrb[0].mxu0 %v1005
    %v1088 = vpop.f32.mrb[0].mxu0
    %v1089 = vadd.f32 0.0, %v1088
    %v1090 = vpop.f32.mrb[0].mxu0
    %1091 = vdwg.mxu0
    %s1092 = scalar_lea.vmem %s3, 128
    %1093 = vst.msk [vmem:[%s1092] sm:$0xff] %vm459, %v1074
    %1094 = vst.msk [vmem:[%s1092 + $0x8] sm:$0xff] %vm459, %v1079
    %1095 = vst.msk [vmem:[%s1092 + $0x10] sm:$0xff] %vm459, %v1084
    %1096 = vst.msk [vmem:[%s1092 + $0x18] sm:$0xff] %vm459, %v1089
    %1097 = vxpose.xlu0.b32.start [1/16] %v319, 128
    %1098 = vxpose.xlu0.b32.cont [2/16] %v324, 128
    %1099 = vxpose.xlu0.b32.cont [3/16] 0.0, 128
    %1100 = vxpose.xlu0.b32.cont [4/16] 0.0, 128
    %1101 = vxpose.xlu0.b32.cont [5/16] 0.0, 128
    %1102 = vxpose.xlu0.b32.cont [6/16] 0.0, 128
    %1103 = vxpose.xlu0.b32.cont [7/16] 0.0, 128
    %1104 = vxpose.xlu0.b32.cont [8/16] 0.0, 128
    %1105 = vxpose.xlu0.b32.cont [9/16] 0.0, 128
    %1106 = vxpose.xlu0.b32.cont [10/16] 0.0, 128
    %1107 = vxpose.xlu0.b32.cont [11/16] 0.0, 128
    %1108 = vxpose.xlu0.b32.cont [12/16] 0.0, 128
    %1109 = vxpose.xlu0.b32.cont [13/16] 0.0, 128
    %1110 = vxpose.xlu0.b32.cont [14/16] 0.0, 128
    %1111 = vxpose.xlu0.b32.cont [15/16] 0.0, 128
    %1112 = vxpose.xlu0.b32.end [16/16] 0.0, 128
    %v1113 = vpop.trf.xlu0
    %v1114 = vpop.trf.xlu0
    %v1115 = vpop.trf.xlu0
    %v1116 = vpop.trf.xlu0
    %v1117 = vpop.trf.xlu0
    %v1118 = vpop.trf.xlu0
    %v1119 = vpop.trf.xlu0
    %v1120 = vpop.trf.xlu0
    %v1121 = vpop.trf.xlu0
    %v1122 = vpop.trf.xlu0
    %v1123 = vpop.trf.xlu0
    %v1124 = vpop.trf.xlu0
    %v1125 = vpop.trf.xlu0
    %v1126 = vpop.trf.xlu0
    %v1127 = vpop.trf.xlu0
    %v1128 = vpop.trf.xlu0
    %v1130 = vsel %vm459, %v1113, 0
    %v1133 = vsel %vm459, %v1114, 0
    %v1136 = vsel %vm459, %v1115, 0
    %v1139 = vsel %vm459, %v1116, 0
    %1141 = vmatprep.subr.mxu0 0.0
    %1142 = vmatpush1.msra.mxu0 %v59
    %1143 = vmatprep.subr.mxu0 0.0
    %1144 = vmatpush1.msra.mxu0 %v60
    %1145 = vmatprep.subr.mxu0 0.0
    %1146 = vmatpush1.msra.mxu0 0.0
    %1147 = vmatprep.subr.mxu0 0.0
    %1148 = vmatpush1.msra.mxu0 0.0
    %1149 = vmatprep.subr.mxu0 0.0
    %1150 = vmatpush1.msra.mxu0 0.0
    %1151 = vmatprep.subr.mxu0 0.0
    %1152 = vmatpush1.msra.mxu0 0.0
    %1153 = vmatprep.subr.mxu0 0.0
    %1154 = vmatpush1.msra.mxu0 0.0
    %1155 = vmatprep.subr.mxu0 0.0
    %1156 = vmatpush1.msra.mxu0 0.0
    %1157 = vmatprep.subr.mxu0 0.0
    %1158 = vmatpush1.msra.mxu0 0.0
    %1159 = vmatprep.subr.mxu0 0.0
    %1160 = vmatpush1.msra.mxu0 0.0
    %1161 = vmatprep.subr.mxu0 0.0
    %1162 = vmatpush1.msra.mxu0 0.0
    %1163 = vmatprep.subr.mxu0 0.0
    %1164 = vmatpush1.msra.mxu0 0.0
    %1165 = vmatprep.subr.mxu0 0.0
    %1166 = vmatpush1.msra.mxu0 0.0
    %1167 = vmatprep.subr.mxu0 0.0
    %1168 = vmatpush1.msra.mxu0 0.0
    %1169 = vmatprep.subr.mxu0 0.0
    %1170 = vmatpush1.msra.mxu0 0.0
    %1171 = vmatprep.subr.mxu0 0.0
    %1172 = vmatpush1.msra.mxu0 0.0
    %1173 = vmatprep.subr.mxu0 0.0
    %1174 = vmatpush1.msra.mxu0 0.0
    %1175 = vmatprep.subr.mxu0 0.0
    %1176 = vmatpush1.msra.mxu0 0.0
    %1177 = vmatprep.subr.mxu0 0.0
    %1178 = vmatpush1.msra.mxu0 0.0
    %1179 = vmatprep.subr.mxu0 0.0
    %1180 = vmatpush1.msra.mxu0 0.0
    %1181 = vmatprep.subr.mxu0 0.0
    %1182 = vmatpush1.msra.mxu0 0.0
    %1183 = vmatprep.subr.mxu0 0.0
    %1184 = vmatpush1.msra.mxu0 0.0
    %1185 = vmatprep.subr.mxu0 0.0
    %1186 = vmatpush1.msra.mxu0 0.0
    %1187 = vmatprep.subr.mxu0 0.0
    %1188 = vmatpush1.msra.mxu0 0.0
    %1189 = vmatprep.subr.mxu0 0.0
    %1190 = vmatpush1.msra.mxu0 0.0
    %1191 = vmatprep.subr.mxu0 0.0
    %1192 = vmatpush1.msra.mxu0 0.0
    %1193 = vmatprep.subr.mxu0 0.0
    %1194 = vmatpush1.msra.mxu0 0.0
    %1195 = vmatprep.subr.mxu0 0.0
    %1196 = vmatpush1.msra.mxu0 0.0
    %1197 = vmatprep.subr.mxu0 0.0
    %1198 = vmatpush1.msra.mxu0 0.0
    %1199 = vmatprep.subr.mxu0 0.0
    %1200 = vmatpush1.msra.mxu0 0.0
    %1201 = vmatprep.subr.mxu0 0.0
    %1202 = vmatpush1.msra.mxu0 0.0
    %1203 = vmatprep.subr.mxu0 0.0
    %1204 = vmatpush1.msra.mxu0 0.0
    %1205 = vmatprep.mubr.f32.mxu0 0.0
    %1206 = vmatmul.mubr.f32.gmra.mrb[0].mxu0 %v1130
    %v1207 = vpop.f32.mrb[0].mxu0
    %v1208 = vadd.f32 0.0, %v1207
    %v1209 = vpop.f32.mrb[0].mxu0
    %1210 = vmatprep.mubr.f32.mxu0 0.0
    %1211 = vmatmul.mubr.f32.gmra.mrb[0].mxu0 %v1133
    %v1212 = vpop.f32.mrb[0].mxu0
    %v1213 = vadd.f32 0.0, %v1212
    %v1214 = vpop.f32.mrb[0].mxu0
    %1215 = vmatprep.mubr.f32.mxu0 0.0
    %1216 = vmatmul.mubr.f32.gmra.mrb[0].mxu0 %v1136
    %v1217 = vpop.f32.mrb[0].mxu0
    %v1218 = vadd.f32 0.0, %v1217
    %v1219 = vpop.f32.mrb[0].mxu0
    %1220 = vmatprep.mubr.f32.mxu0 0.0
    %1221 = vmatmul.mubr.f32.gmra.mrb[0].mxu0 %v1139
    %v1222 = vpop.f32.mrb[0].mxu0
    %v1223 = vadd.f32 0.0, %v1222
    %v1224 = vpop.f32.mrb[0].mxu0
    %1225 = vdwg.mxu0
    %s1226 = scalar_lea.vmem %s3, 160
    %1227 = vst.msk [vmem:[%s1226] sm:$0xff] %vm459, %v1208
    %1228 = vst.msk [vmem:[%s1226 + $0x8] sm:$0xff] %vm459, %v1213
    %1229 = vst.msk [vmem:[%s1226 + $0x10] sm:$0xff] %vm459, %v1218
    %1230 = vst.msk [vmem:[%s1226 + $0x18] sm:$0xff] %vm459, %v1223
    %1231 = vxpose.xlu0.b32.start [1/16] %v329, 128
    %1232 = vxpose.xlu0.b32.cont [2/16] %v334, 128
    %1233 = vxpose.xlu0.b32.cont [3/16] 0.0, 128
    %1234 = vxpose.xlu0.b32.cont [4/16] 0.0, 128
    %1235 = vxpose.xlu0.b32.cont [5/16] 0.0, 128
    %1236 = vxpose.xlu0.b32.cont [6/16] 0.0, 128
    %1237 = vxpose.xlu0.b32.cont [7/16] 0.0, 128
    %1238 = vxpose.xlu0.b32.cont [8/16] 0.0, 128
    %1239 = vxpose.xlu0.b32.cont [9/16] 0.0, 128
    %1240 = vxpose.xlu0.b32.cont [10/16] 0.0, 128
    %1241 = vxpose.xlu0.b32.cont [11/16] 0.0, 128
    %1242 = vxpose.xlu0.b32.cont [12/16] 0.0, 128
    %1243 = vxpose.xlu0.b32.cont [13/16] 0.0, 128
    %1244 = vxpose.xlu0.b32.cont [14/16] 0.0, 128
    %1245 = vxpose.xlu0.b32.cont [15/16] 0.0, 128
    %1246 = vxpose.xlu0.b32.end [16/16] 0.0, 128
    %v1247 = vpop.trf.xlu0
    %v1248 = vpop.trf.xlu0
    %v1249 = vpop.trf.xlu0
    %v1250 = vpop.trf.xlu0
    %v1251 = vpop.trf.xlu0
    %v1252 = vpop.trf.xlu0
    %v1253 = vpop.trf.xlu0
    %v1254 = vpop.trf.xlu0
    %v1255 = vpop.trf.xlu0
    %v1256 = vpop.trf.xlu0
    %v1257 = vpop.trf.xlu0
    %v1258 = vpop.trf.xlu0
    %v1259 = vpop.trf.xlu0
    %v1260 = vpop.trf.xlu0
    %v1261 = vpop.trf.xlu0
    %v1262 = vpop.trf.xlu0
    %v1264 = vsel %vm459, %v1247, 0
    %v1267 = vsel %vm459, %v1248, 0
    %v1270 = vsel %vm459, %v1249, 0
    %v1273 = vsel %vm459, %v1250, 0
    %1275 = vmatprep.subr.mxu0 0.0
    %1276 = vmatpush1.msra.mxu0 %v59
    %1277 = vmatprep.subr.mxu0 0.0
    %1278 = vmatpush1.msra.mxu0 %v60
    %1279 = vmatprep.subr.mxu0 0.0
    %1280 = vmatpush1.msra.mxu0 0.0
    %1281 = vmatprep.subr.mxu0 0.0
    %1282 = vmatpush1.msra.mxu0 0.0
    %1283 = vmatprep.subr.mxu0 0.0
    %1284 = vmatpush1.msra.mxu0 0.0
    %1285 = vmatprep.subr.mxu0 0.0
    %1286 = vmatpush1.msra.mxu0 0.0
    %1287 = vmatprep.subr.mxu0 0.0
    %1288 = vmatpush1.msra.mxu0 0.0
    %1289 = vmatprep.subr.mxu0 0.0
    %1290 = vmatpush1.msra.mxu0 0.0
    %1291 = vmatprep.subr.mxu0 0.0
    %1292 = vmatpush1.msra.mxu0 0.0
    %1293 = vmatprep.subr.mxu0 0.0
    %1294 = vmatpush1.msra.mxu0 0.0
    %1295 = vmatprep.subr.mxu0 0.0
    %1296 = vmatpush1.msra.mxu0 0.0
    %1297 = vmatprep.subr.mxu0 0.0
    %1298 = vmatpush1.msra.mxu0 0.0
    %1299 = vmatprep.subr.mxu0 0.0
    %1300 = vmatpush1.msra.mxu0 0.0
    %1301 = vmatprep.subr.mxu0 0.0
    %1302 = vmatpush1.msra.mxu0 0.0
    %1303 = vmatprep.subr.mxu0 0.0
    %1304 = vmatpush1.msra.mxu0 0.0
    %1305 = vmatprep.subr.mxu0 0.0
    %1306 = vmatpush1.msra.mxu0 0.0
    %1307 = vmatprep.subr.mxu0 0.0
    %1308 = vmatpush1.msra.mxu0 0.0
    %1309 = vmatprep.subr.mxu0 0.0
    %1310 = vmatpush1.msra.mxu0 0.0
    %1311 = vmatprep.subr.mxu0 0.0
    %1312 = vmatpush1.msra.mxu0 0.0
    %1313 = vmatprep.subr.mxu0 0.0
    %1314 = vmatpush1.msra.mxu0 0.0
    %1315 = vmatprep.subr.mxu0 0.0
    %1316 = vmatpush1.msra.mxu0 0.0
    %1317 = vmatprep.subr.mxu0 0.0
    %1318 = vmatpush1.msra.mxu0 0.0
    %1319 = vmatprep.subr.mxu0 0.0
    %1320 = vmatpush1.msra.mxu0 0.0
    %1321 = vmatprep.subr.mxu0 0.0
    %1322 = vmatpush1.msra.mxu0 0.0
    %1323 = vmatprep.subr.mxu0 0.0
    %1324 = vmatpush1.msra.mxu0 0.0
    %1325 = vmatprep.subr.mxu0 0.0
    %1326 = vmatpush1.msra.mxu0 0.0
    %1327 = vmatprep.subr.mxu0 0.0
    %1328 = vmatpush1.msra.mxu0 0.0
    %1329 = vmatprep.subr.mxu0 0.0
    %1330 = vmatpush1.msra.mxu0 0.0
    %1331 = vmatprep.subr.mxu0 0.0
    %1332 = vmatpush1.msra.mxu0 0.0
    %1333 = vmatprep.subr.mxu0 0.0
    %1334 = vmatpush1.msra.mxu0 0.0
    %1335 = vmatprep.subr.mxu0 0.0
    %1336 = vmatpush1.msra.mxu0 0.0
    %1337 = vmatprep.subr.mxu0 0.0
    %1338 = vmatpush1.msra.mxu0 0.0
    %1339 = vmatprep.mubr.f32.mxu0 0.0
    %1340 = vmatmul.mubr.f32.gmra.mrb[0].mxu0 %v1264
    %v1341 = vpop.f32.mrb[0].mxu0
    %v1342 = vadd.f32 0.0, %v1341
    %v1343 = vpop.f32.mrb[0].mxu0
    %1344 = vmatprep.mubr.f32.mxu0 0.0
    %1345 = vmatmul.mubr.f32.gmra.mrb[0].mxu0 %v1267
    %v1346 = vpop.f32.mrb[0].mxu0
    %v1347 = vadd.f32 0.0, %v1346
    %v1348 = vpop.f32.mrb[0].mxu0
    %1349 = vmatprep.mubr.f32.mxu0 0.0
    %1350 = vmatmul.mubr.f32.gmra.mrb[0].mxu0 %v1270
    %v1351 = vpop.f32.mrb[0].mxu0
    %v1352 = vadd.f32 0.0, %v1351
    %v1353 = vpop.f32.mrb[0].mxu0
    %1354 = vmatprep.mubr.f32.mxu0 0.0
    %1355 = vmatmul.mubr.f32.gmra.mrb[0].mxu0 %v1273
    %v1356 = vpop.f32.mrb[0].mxu0
    %v1357 = vadd.f32 0.0, %v1356
    %v1358 = vpop.f32.mrb[0].mxu0
    %1359 = vdwg.mxu0
    %s1360 = scalar_lea.vmem %s3, 192
    %1361 = vst.msk [vmem:[%s1360] sm:$0xff] %vm459, %v1342
    %1362 = vst.msk [vmem:[%s1360 + $0x8] sm:$0xff] %vm459, %v1347
    %1363 = vst.msk [vmem:[%s1360 + $0x10] sm:$0xff] %vm459, %v1352
    %1364 = vst.msk [vmem:[%s1360 + $0x18] sm:$0xff] %vm459, %v1357
    %1365 = vxpose.xlu0.b32.start [1/16] %v339, 128
    %1366 = vxpose.xlu0.b32.cont [2/16] %v344, 128
    %1367 = vxpose.xlu0.b32.cont [3/16] 0.0, 128
    %1368 = vxpose.xlu0.b32.cont [4/16] 0.0, 128
    %1369 = vxpose.xlu0.b32.cont [5/16] 0.0, 128
    %1370 = vxpose.xlu0.b32.cont [6/16] 0.0, 128
    %1371 = vxpose.xlu0.b32.cont [7/16] 0.0, 128
    %1372 = vxpose.xlu0.b32.cont [8/16] 0.0, 128
    %1373 = vxpose.xlu0.b32.cont [9/16] 0.0, 128
    %1374 = vxpose.xlu0.b32.cont [10/16] 0.0, 128
    %1375 = vxpose.xlu0.b32.cont [11/16] 0.0, 128
    %1376 = vxpose.xlu0.b32.cont [12/16] 0.0, 128
    %1377 = vxpose.xlu0.b32.cont [13/16] 0.0, 128
    %1378 = vxpose.xlu0.b32.cont [14/16] 0.0, 128
    %1379 = vxpose.xlu0.b32.cont [15/16] 0.0, 128
    %1380 = vxpose.xlu0.b32.end [16/16] 0.0, 128
    %v1381 = vpop.trf.xlu0
    %v1382 = vpop.trf.xlu0
    %v1383 = vpop.trf.xlu0
    %v1384 = vpop.trf.xlu0
    %v1385 = vpop.trf.xlu0
    %v1386 = vpop.trf.xlu0
    %v1387 = vpop.trf.xlu0
    %v1388 = vpop.trf.xlu0
    %v1389 = vpop.trf.xlu0
    %v1390 = vpop.trf.xlu0
    %v1391 = vpop.trf.xlu0
    %v1392 = vpop.trf.xlu0
    %v1393 = vpop.trf.xlu0
    %v1394 = vpop.trf.xlu0
    %v1395 = vpop.trf.xlu0
    %v1396 = vpop.trf.xlu0
    %v1398 = vsel %vm459, %v1381, 0
    %v1401 = vsel %vm459, %v1382, 0
    %v1404 = vsel %vm459, %v1383, 0
    %v1407 = vsel %vm459, %v1384, 0
    %1409 = vmatprep.subr.mxu0 0.0
    %1410 = vmatpush1.msra.mxu0 %v59
    %1411 = vmatprep.subr.mxu0 0.0
    %1412 = vmatpush1.msra.mxu0 %v60
    %1413 = vmatprep.subr.mxu0 0.0
    %1414 = vmatpush1.msra.mxu0 0.0
    %1415 = vmatprep.subr.mxu0 0.0
    %1416 = vmatpush1.msra.mxu0 0.0
    %1417 = vmatprep.subr.mxu0 0.0
    %1418 = vmatpush1.msra.mxu0 0.0
    %1419 = vmatprep.subr.mxu0 0.0
    %1420 = vmatpush1.msra.mxu0 0.0
    %1421 = vmatprep.subr.mxu0 0.0
    %1422 = vmatpush1.msra.mxu0 0.0
    %1423 = vmatprep.subr.mxu0 0.0
    %1424 = vmatpush1.msra.mxu0 0.0
    %1425 = vmatprep.subr.mxu0 0.0
    %1426 = vmatpush1.msra.mxu0 0.0
    %1427 = vmatprep.subr.mxu0 0.0
    %1428 = vmatpush1.msra.mxu0 0.0
    %1429 = vmatprep.subr.mxu0 0.0
    %1430 = vmatpush1.msra.mxu0 0.0
    %1431 = vmatprep.subr.mxu0 0.0
    %1432 = vmatpush1.msra.mxu0 0.0
    %1433 = vmatprep.subr.mxu0 0.0
    %1434 = vmatpush1.msra.mxu0 0.0
    %1435 = vmatprep.subr.mxu0 0.0
    %1436 = vmatpush1.msra.mxu0 0.0
    %1437 = vmatprep.subr.mxu0 0.0
    %1438 = vmatpush1.msra.mxu0 0.0
    %1439 = vmatprep.subr.mxu0 0.0
    %1440 = vmatpush1.msra.mxu0 0.0
    %1441 = vmatprep.subr.mxu0 0.0
    %1442 = vmatpush1.msra.mxu0 0.0
    %1443 = vmatprep.subr.mxu0 0.0
    %1444 = vmatpush1.msra.mxu0 0.0
    %1445 = vmatprep.subr.mxu0 0.0
    %1446 = vmatpush1.msra.mxu0 0.0
    %1447 = vmatprep.subr.mxu0 0.0
    %1448 = vmatpush1.msra.mxu0 0.0
    %1449 = vmatprep.subr.mxu0 0.0
    %1450 = vmatpush1.msra.mxu0 0.0
    %1451 = vmatprep.subr.mxu0 0.0
    %1452 = vmatpush1.msra.mxu0 0.0
    %1453 = vmatprep.subr.mxu0 0.0
    %1454 = vmatpush1.msra.mxu0 0.0
    %1455 = vmatprep.subr.mxu0 0.0
    %1456 = vmatpush1.msra.mxu0 0.0
    %1457 = vmatprep.subr.mxu0 0.0
    %1458 = vmatpush1.msra.mxu0 0.0
    %1459 = vmatprep.subr.mxu0 0.0
    %1460 = vmatpush1.msra.mxu0 0.0
    %1461 = vmatprep.subr.mxu0 0.0
    %1462 = vmatpush1.msra.mxu0 0.0
    %1463 = vmatprep.subr.mxu0 0.0
    %1464 = vmatpush1.msra.mxu0 0.0
    %1465 = vmatprep.subr.mxu0 0.0
    %1466 = vmatpush1.msra.mxu0 0.0
    %1467 = vmatprep.subr.mxu0 0.0
    %1468 = vmatpush1.msra.mxu0 0.0
    %1469 = vmatprep.subr.mxu0 0.0
    %1470 = vmatpush1.msra.mxu0 0.0
    %1471 = vmatprep.subr.mxu0 0.0
    %1472 = vmatpush1.msra.mxu0 0.0
    %1473 = vmatprep.mubr.f32.mxu0 0.0
    %1474 = vmatmul.mubr.f32.gmra.mrb[0].mxu0 %v1398
    %v1475 = vpop.f32.mrb[0].mxu0
    %v1476 = vadd.f32 0.0, %v1475
    %v1477 = vpop.f32.mrb[0].mxu0
    %1478 = vmatprep.mubr.f32.mxu0 0.0
    %1479 = vmatmul.mubr.f32.gmra.mrb[0].mxu0 %v1401
    %v1480 = vpop.f32.mrb[0].mxu0
    %v1481 = vadd.f32 0.0, %v1480
    %v1482 = vpop.f32.mrb[0].mxu0
    %1483 = vmatprep.mubr.f32.mxu0 0.0
    %1484 = vmatmul.mubr.f32.gmra.mrb[0].mxu0 %v1404
    %v1485 = vpop.f32.mrb[0].mxu0
    %v1486 = vadd.f32 0.0, %v1485
    %v1487 = vpop.f32.mrb[0].mxu0
    %1488 = vmatprep.mubr.f32.mxu0 0.0
    %1489 = vmatmul.mubr.f32.gmra.mrb[0].mxu0 %v1407
    %v1490 = vpop.f32.mrb[0].mxu0
    %v1491 = vadd.f32 0.0, %v1490
    %v1492 = vpop.f32.mrb[0].mxu0
    %1493 = vdwg.mxu0
    %s1494 = scalar_lea.vmem %s3, 224
    %1495 = vst.msk [vmem:[%s1494] sm:$0xff] %vm459, %v1476
    %1496 = vst.msk [vmem:[%s1494 + $0x8] sm:$0xff] %vm459, %v1481
    %1497 = vst.msk [vmem:[%s1494 + $0x10] sm:$0xff] %vm459, %v1486
    %1498 = vst.msk [vmem:[%s1494 + $0x18] sm:$0xff] %vm459, %v1491
    %1499 = vxpose.xlu0.b32.start [1/16] %v349, 128
    %1500 = vxpose.xlu0.b32.cont [2/16] %v354, 128
    %1501 = vxpose.xlu0.b32.cont [3/16] 0.0, 128
    %1502 = vxpose.xlu0.b32.cont [4/16] 0.0, 128
    %1503 = vxpose.xlu0.b32.cont [5/16] 0.0, 128
    %1504 = vxpose.xlu0.b32.cont [6/16] 0.0, 128
    %1505 = vxpose.xlu0.b32.cont [7/16] 0.0, 128
    %1506 = vxpose.xlu0.b32.cont [8/16] 0.0, 128
    %1507 = vxpose.xlu0.b32.cont [9/16] 0.0, 128
    %1508 = vxpose.xlu0.b32.cont [10/16] 0.0, 128
    %1509 = vxpose.xlu0.b32.cont [11/16] 0.0, 128
    %1510 = vxpose.xlu0.b32.cont [12/16] 0.0, 128
    %1511 = vxpose.xlu0.b32.cont [13/16] 0.0, 128
    %1512 = vxpose.xlu0.b32.cont [14/16] 0.0, 128
    %1513 = vxpose.xlu0.b32.cont [15/16] 0.0, 128
    %1514 = vxpose.xlu0.b32.end [16/16] 0.0, 128
    %v1515 = vpop.trf.xlu0
    %v1516 = vpop.trf.xlu0
    %v1517 = vpop.trf.xlu0
    %v1518 = vpop.trf.xlu0
    %v1519 = vpop.trf.xlu0
    %v1520 = vpop.trf.xlu0
    %v1521 = vpop.trf.xlu0
    %v1522 = vpop.trf.xlu0
    %v1523 = vpop.trf.xlu0
    %v1524 = vpop.trf.xlu0
    %v1525 = vpop.trf.xlu0
    %v1526 = vpop.trf.xlu0
    %v1527 = vpop.trf.xlu0
    %v1528 = vpop.trf.xlu0
    %v1529 = vpop.trf.xlu0
    %v1530 = vpop.trf.xlu0
    %v1532 = vsel %vm459, %v1515, 0
    %v1535 = vsel %vm459, %v1516, 0
    %v1538 = vsel %vm459, %v1517, 0
    %v1541 = vsel %vm459, %v1518, 0
    %1543 = vmatprep.subr.mxu0 0.0
    %1544 = vmatpush1.msra.mxu0 %v59
    %1545 = vmatprep.subr.mxu0 0.0
    %1546 = vmatpush1.msra.mxu0 %v60
    %1547 = vmatprep.subr.mxu0 0.0
    %1548 = vmatpush1.msra.mxu0 0.0
    %1549 = vmatprep.subr.mxu0 0.0
    %1550 = vmatpush1.msra.mxu0 0.0
    %1551 = vmatprep.subr.mxu0 0.0
    %1552 = vmatpush1.msra.mxu0 0.0
    %1553 = vmatprep.subr.mxu0 0.0
    %1554 = vmatpush1.msra.mxu0 0.0
    %1555 = vmatprep.subr.mxu0 0.0
    %1556 = vmatpush1.msra.mxu0 0.0
    %1557 = vmatprep.subr.mxu0 0.0
    %1558 = vmatpush1.msra.mxu0 0.0
    %1559 = vmatprep.subr.mxu0 0.0
    %1560 = vmatpush1.msra.mxu0 0.0
    %1561 = vmatprep.subr.mxu0 0.0
    %1562 = vmatpush1.msra.mxu0 0.0
    %1563 = vmatprep.subr.mxu0 0.0
    %1564 = vmatpush1.msra.mxu0 0.0
    %1565 = vmatprep.subr.mxu0 0.0
    %1566 = vmatpush1.msra.mxu0 0.0
    %1567 = vmatprep.subr.mxu0 0.0
    %1568 = vmatpush1.msra.mxu0 0.0
    %1569 = vmatprep.subr.mxu0 0.0
    %1570 = vmatpush1.msra.mxu0 0.0
    %1571 = vmatprep.subr.mxu0 0.0
    %1572 = vmatpush1.msra.mxu0 0.0
    %1573 = vmatprep.subr.mxu0 0.0
    %1574 = vmatpush1.msra.mxu0 0.0
    %1575 = vmatprep.subr.mxu0 0.0
    %1576 = vmatpush1.msra.mxu0 0.0
    %1577 = vmatprep.subr.mxu0 0.0
    %1578 = vmatpush1.msra.mxu0 0.0
    %1579 = vmatprep.subr.mxu0 0.0
    %1580 = vmatpush1.msra.mxu0 0.0
    %1581 = vmatprep.subr.mxu0 0.0
    %1582 = vmatpush1.msra.mxu0 0.0
    %1583 = vmatprep.subr.mxu0 0.0
    %1584 = vmatpush1.msra.mxu0 0.0
    %1585 = vmatprep.subr.mxu0 0.0
    %1586 = vmatpush1.msra.mxu0 0.0
    %1587 = vmatprep.subr.mxu0 0.0
    %1588 = vmatpush1.msra.mxu0 0.0
    %1589 = vmatprep.subr.mxu0 0.0
    %1590 = vmatpush1.msra.mxu0 0.0
    %1591 = vmatprep.subr.mxu0 0.0
    %1592 = vmatpush1.msra.mxu0 0.0
    %1593 = vmatprep.subr.mxu0 0.0
    %1594 = vmatpush1.msra.mxu0 0.0
    %1595 = vmatprep.subr.mxu0 0.0
    %1596 = vmatpush1.msra.mxu0 0.0
    %1597 = vmatprep.subr.mxu0 0.0
    %1598 = vmatpush1.msra.mxu0 0.0
    %1599 = vmatprep.subr.mxu0 0.0
    %1600 = vmatpush1.msra.mxu0 0.0
    %1601 = vmatprep.subr.mxu0 0.0
    %1602 = vmatpush1.msra.mxu0 0.0
    %1603 = vmatprep.subr.mxu0 0.0
    %1604 = vmatpush1.msra.mxu0 0.0
    %1605 = vmatprep.subr.mxu0 0.0
    %1606 = vmatpush1.msra.mxu0 0.0
    %1607 = vmatprep.mubr.f32.mxu0 0.0
    %1608 = vmatmul.mubr.f32.gmra.mrb[0].mxu0 %v1532
    %v1609 = vpop.f32.mrb[0].mxu0
    %v1610 = vadd.f32 0.0, %v1609
    %v1611 = vpop.f32.mrb[0].mxu0
    %1612 = vmatprep.mubr.f32.mxu0 0.0
    %1613 = vmatmul.mubr.f32.gmra.mrb[0].mxu0 %v1535
    %v1614 = vpop.f32.mrb[0].mxu0
    %v1615 = vadd.f32 0.0, %v1614
    %v1616 = vpop.f32.mrb[0].mxu0
    %1617 = vmatprep.mubr.f32.mxu0 0.0
    %1618 = vmatmul.mubr.f32.gmra.mrb[0].mxu0 %v1538
    %v1619 = vpop.f32.mrb[0].mxu0
    %v1620 = vadd.f32 0.0, %v1619
    %v1621 = vpop.f32.mrb[0].mxu0
    %1622 = vmatprep.mubr.f32.mxu0 0.0
    %1623 = vmatmul.mubr.f32.gmra.mrb[0].mxu0 %v1541
    %v1624 = vpop.f32.mrb[0].mxu0
    %v1625 = vadd.f32 0.0, %v1624
    %v1626 = vpop.f32.mrb[0].mxu0
    %1627 = vdwg.mxu0
    %s1628 = scalar_lea.vmem %s3, 256
    %1629 = vst.msk [vmem:[%s1628] sm:$0xff] %vm459, %v1610
    %1630 = vst.msk [vmem:[%s1628 + $0x8] sm:$0xff] %vm459, %v1615
    %1631 = vst.msk [vmem:[%s1628 + $0x10] sm:$0xff] %vm459, %v1620
    %1632 = vst.msk [vmem:[%s1628 + $0x18] sm:$0xff] %vm459, %v1625
    %1633 = vxpose.xlu0.b32.start [1/16] %v359, 128
    %1634 = vxpose.xlu0.b32.cont [2/16] %v364, 128
    %1635 = vxpose.xlu0.b32.cont [3/16] 0.0, 128
    %1636 = vxpose.xlu0.b32.cont [4/16] 0.0, 128
    %1637 = vxpose.xlu0.b32.cont [5/16] 0.0, 128
    %1638 = vxpose.xlu0.b32.cont [6/16] 0.0, 128
    %1639 = vxpose.xlu0.b32.cont [7/16] 0.0, 128
    %1640 = vxpose.xlu0.b32.cont [8/16] 0.0, 128
    %1641 = vxpose.xlu0.b32.cont [9/16] 0.0, 128
    %1642 = vxpose.xlu0.b32.cont [10/16] 0.0, 128
    %1643 = vxpose.xlu0.b32.cont [11/16] 0.0, 128
    %1644 = vxpose.xlu0.b32.cont [12/16] 0.0, 128
    %1645 = vxpose.xlu0.b32.cont [13/16] 0.0, 128
    %1646 = vxpose.xlu0.b32.cont [14/16] 0.0, 128
    %1647 = vxpose.xlu0.b32.cont [15/16] 0.0, 128
    %1648 = vxpose.xlu0.b32.end [16/16] 0.0, 128
    %v1649 = vpop.trf.xlu0
    %v1650 = vpop.trf.xlu0
    %v1651 = vpop.trf.xlu0
    %v1652 = vpop.trf.xlu0
    %v1653 = vpop.trf.xlu0
    %v1654 = vpop.trf.xlu0
    %v1655 = vpop.trf.xlu0
    %v1656 = vpop.trf.xlu0
    %v1657 = vpop.trf.xlu0
    %v1658 = vpop.trf.xlu0
    %v1659 = vpop.trf.xlu0
    %v1660 = vpop.trf.xlu0
    %v1661 = vpop.trf.xlu0
    %v1662 = vpop.trf.xlu0
    %v1663 = vpop.trf.xlu0
    %v1664 = vpop.trf.xlu0
    %v1666 = vsel %vm459, %v1649, 0
    %v1669 = vsel %vm459, %v1650, 0
    %v1672 = vsel %vm459, %v1651, 0
    %v1675 = vsel %vm459, %v1652, 0
    %1677 = vmatprep.subr.mxu0 0.0
    %1678 = vmatpush1.msra.mxu0 %v59
    %1679 = vmatprep.subr.mxu0 0.0
    %1680 = vmatpush1.msra.mxu0 %v60
    %1681 = vmatprep.subr.mxu0 0.0
    %1682 = vmatpush1.msra.mxu0 0.0
    %1683 = vmatprep.subr.mxu0 0.0
    %1684 = vmatpush1.msra.mxu0 0.0
    %1685 = vmatprep.subr.mxu0 0.0
    %1686 = vmatpush1.msra.mxu0 0.0
    %1687 = vmatprep.subr.mxu0 0.0
    %1688 = vmatpush1.msra.mxu0 0.0
    %1689 = vmatprep.subr.mxu0 0.0
    %1690 = vmatpush1.msra.mxu0 0.0
    %1691 = vmatprep.subr.mxu0 0.0
    %1692 = vmatpush1.msra.mxu0 0.0
    %1693 = vmatprep.subr.mxu0 0.0
    %1694 = vmatpush1.msra.mxu0 0.0
    %1695 = vmatprep.subr.mxu0 0.0
    %1696 = vmatpush1.msra.mxu0 0.0
    %1697 = vmatprep.subr.mxu0 0.0
    %1698 = vmatpush1.msra.mxu0 0.0
    %1699 = vmatprep.subr.mxu0 0.0
    %1700 = vmatpush1.msra.mxu0 0.0
    %1701 = vmatprep.subr.mxu0 0.0
    %1702 = vmatpush1.msra.mxu0 0.0
    %1703 = vmatprep.subr.mxu0 0.0
    %1704 = vmatpush1.msra.mxu0 0.0
    %1705 = vmatprep.subr.mxu0 0.0
    %1706 = vmatpush1.msra.mxu0 0.0
    %1707 = vmatprep.subr.mxu0 0.0
    %1708 = vmatpush1.msra.mxu0 0.0
    %1709 = vmatprep.subr.mxu0 0.0
    %1710 = vmatpush1.msra.mxu0 0.0
    %1711 = vmatprep.subr.mxu0 0.0
    %1712 = vmatpush1.msra.mxu0 0.0
    %1713 = vmatprep.subr.mxu0 0.0
    %1714 = vmatpush1.msra.mxu0 0.0
    %1715 = vmatprep.subr.mxu0 0.0
    %1716 = vmatpush1.msra.mxu0 0.0
    %1717 = vmatprep.subr.mxu0 0.0
    %1718 = vmatpush1.msra.mxu0 0.0
    %1719 = vmatprep.subr.mxu0 0.0
    %1720 = vmatpush1.msra.mxu0 0.0
    %1721 = vmatprep.subr.mxu0 0.0
    %1722 = vmatpush1.msra.mxu0 0.0
    %1723 = vmatprep.subr.mxu0 0.0
    %1724 = vmatpush1.msra.mxu0 0.0
    %1725 = vmatprep.subr.mxu0 0.0
    %1726 = vmatpush1.msra.mxu0 0.0
    %1727 = vmatprep.subr.mxu0 0.0
    %1728 = vmatpush1.msra.mxu0 0.0
    %1729 = vmatprep.subr.mxu0 0.0
    %1730 = vmatpush1.msra.mxu0 0.0
    %1731 = vmatprep.subr.mxu0 0.0
    %1732 = vmatpush1.msra.mxu0 0.0
    %1733 = vmatprep.subr.mxu0 0.0
    %1734 = vmatpush1.msra.mxu0 0.0
    %1735 = vmatprep.subr.mxu0 0.0
    %1736 = vmatpush1.msra.mxu0 0.0
    %1737 = vmatprep.subr.mxu0 0.0
    %1738 = vmatpush1.msra.mxu0 0.0
    %1739 = vmatprep.subr.mxu0 0.0
    %1740 = vmatpush1.msra.mxu0 0.0
    %1741 = vmatprep.mubr.f32.mxu0 0.0
    %1742 = vmatmul.mubr.f32.gmra.mrb[0].mxu0 %v1666
    %v1743 = vpop.f32.mrb[0].mxu0
    %v1744 = vadd.f32 0.0, %v1743
    %v1745 = vpop.f32.mrb[0].mxu0
    %1746 = vmatprep.mubr.f32.mxu0 0.0
    %1747 = vmatmul.mubr.f32.gmra.mrb[0].mxu0 %v1669
    %v1748 = vpop.f32.mrb[0].mxu0
    %v1749 = vadd.f32 0.0, %v1748
    %v1750 = vpop.f32.mrb[0].mxu0
    %1751 = vmatprep.mubr.f32.mxu0 0.0
    %1752 = vmatmul.mubr.f32.gmra.mrb[0].mxu0 %v1672
    %v1753 = vpop.f32.mrb[0].mxu0
    %v1754 = vadd.f32 0.0, %v1753
    %v1755 = vpop.f32.mrb[0].mxu0
    %1756 = vmatprep.mubr.f32.mxu0 0.0
    %1757 = vmatmul.mubr.f32.gmra.mrb[0].mxu0 %v1675
    %v1758 = vpop.f32.mrb[0].mxu0
    %v1759 = vadd.f32 0.0, %v1758
    %v1760 = vpop.f32.mrb[0].mxu0
    %1761 = vdwg.mxu0
    %s1762 = scalar_lea.vmem %s3, 288
    %1763 = vst.msk [vmem:[%s1762] sm:$0xff] %vm459, %v1744
    %1764 = vst.msk [vmem:[%s1762 + $0x8] sm:$0xff] %vm459, %v1749
    %1765 = vst.msk [vmem:[%s1762 + $0x10] sm:$0xff] %vm459, %v1754
    %1766 = vst.msk [vmem:[%s1762 + $0x18] sm:$0xff] %vm459, %v1759
    %1767 = vxpose.xlu0.b32.start [1/16] %v369, 128
    %1768 = vxpose.xlu0.b32.cont [2/16] %v374, 128
    %1769 = vxpose.xlu0.b32.cont [3/16] 0.0, 128
    %1770 = vxpose.xlu0.b32.cont [4/16] 0.0, 128
    %1771 = vxpose.xlu0.b32.cont [5/16] 0.0, 128
    %1772 = vxpose.xlu0.b32.cont [6/16] 0.0, 128
    %1773 = vxpose.xlu0.b32.cont [7/16] 0.0, 128
    %1774 = vxpose.xlu0.b32.cont [8/16] 0.0, 128
    %1775 = vxpose.xlu0.b32.cont [9/16] 0.0, 128
    %1776 = vxpose.xlu0.b32.cont [10/16] 0.0, 128
    %1777 = vxpose.xlu0.b32.cont [11/16] 0.0, 128
    %1778 = vxpose.xlu0.b32.cont [12/16] 0.0, 128
    %1779 = vxpose.xlu0.b32.cont [13/16] 0.0, 128
    %1780 = vxpose.xlu0.b32.cont [14/16] 0.0, 128
    %1781 = vxpose.xlu0.b32.cont [15/16] 0.0, 128
    %1782 = vxpose.xlu0.b32.end [16/16] 0.0, 128
    %v1783 = vpop.trf.xlu0
    %v1784 = vpop.trf.xlu0
    %v1785 = vpop.trf.xlu0
    %v1786 = vpop.trf.xlu0
    %v1787 = vpop.trf.xlu0
    %v1788 = vpop.trf.xlu0
    %v1789 = vpop.trf.xlu0
    %v1790 = vpop.trf.xlu0
    %v1791 = vpop.trf.xlu0
    %v1792 = vpop.trf.xlu0
    %v1793 = vpop.trf.xlu0
    %v1794 = vpop.trf.xlu0
    %v1795 = vpop.trf.xlu0
    %v1796 = vpop.trf.xlu0
    %v1797 = vpop.trf.xlu0
    %v1798 = vpop.trf.xlu0
    %v1800 = vsel %vm459, %v1783, 0
    %v1803 = vsel %vm459, %v1784, 0
    %v1806 = vsel %vm459, %v1785, 0
    %v1809 = vsel %vm459, %v1786, 0
    %1811 = vmatprep.subr.mxu0 0.0
    %1812 = vmatpush1.msra.mxu0 %v59
    %1813 = vmatprep.subr.mxu0 0.0
    %1814 = vmatpush1.msra.mxu0 %v60
    %1815 = vmatprep.subr.mxu0 0.0
    %1816 = vmatpush1.msra.mxu0 0.0
    %1817 = vmatprep.subr.mxu0 0.0
    %1818 = vmatpush1.msra.mxu0 0.0
    %1819 = vmatprep.subr.mxu0 0.0
    %1820 = vmatpush1.msra.mxu0 0.0
    %1821 = vmatprep.subr.mxu0 0.0
    %1822 = vmatpush1.msra.mxu0 0.0
    %1823 = vmatprep.subr.mxu0 0.0
    %1824 = vmatpush1.msra.mxu0 0.0
    %1825 = vmatprep.subr.mxu0 0.0
    %1826 = vmatpush1.msra.mxu0 0.0
    %1827 = vmatprep.subr.mxu0 0.0
    %1828 = vmatpush1.msra.mxu0 0.0
    %1829 = vmatprep.subr.mxu0 0.0
    %1830 = vmatpush1.msra.mxu0 0.0
    %1831 = vmatprep.subr.mxu0 0.0
    %1832 = vmatpush1.msra.mxu0 0.0
    %1833 = vmatprep.subr.mxu0 0.0
    %1834 = vmatpush1.msra.mxu0 0.0
    %1835 = vmatprep.subr.mxu0 0.0
    %1836 = vmatpush1.msra.mxu0 0.0
    %1837 = vmatprep.subr.mxu0 0.0
    %1838 = vmatpush1.msra.mxu0 0.0
    %1839 = vmatprep.subr.mxu0 0.0
    %1840 = vmatpush1.msra.mxu0 0.0
    %1841 = vmatprep.subr.mxu0 0.0
    %1842 = vmatpush1.msra.mxu0 0.0
    %1843 = vmatprep.subr.mxu0 0.0
    %1844 = vmatpush1.msra.mxu0 0.0
    %1845 = vmatprep.subr.mxu0 0.0
    %1846 = vmatpush1.msra.mxu0 0.0
    %1847 = vmatprep.subr.mxu0 0.0
    %1848 = vmatpush1.msra.mxu0 0.0
    %1849 = vmatprep.subr.mxu0 0.0
    %1850 = vmatpush1.msra.mxu0 0.0
    %1851 = vmatprep.subr.mxu0 0.0
    %1852 = vmatpush1.msra.mxu0 0.0
    %1853 = vmatprep.subr.mxu0 0.0
    %1854 = vmatpush1.msra.mxu0 0.0
    %1855 = vmatprep.subr.mxu0 0.0
    %1856 = vmatpush1.msra.mxu0 0.0
    %1857 = vmatprep.subr.mxu0 0.0
    %1858 = vmatpush1.msra.mxu0 0.0
    %1859 = vmatprep.subr.mxu0 0.0
    %1860 = vmatpush1.msra.mxu0 0.0
    %1861 = vmatprep.subr.mxu0 0.0
    %1862 = vmatpush1.msra.mxu0 0.0
    %1863 = vmatprep.subr.mxu0 0.0
    %1864 = vmatpush1.msra.mxu0 0.0
    %1865 = vmatprep.subr.mxu0 0.0
    %1866 = vmatpush1.msra.mxu0 0.0
    %1867 = vmatprep.subr.mxu0 0.0
    %1868 = vmatpush1.msra.mxu0 0.0
    %1869 = vmatprep.subr.mxu0 0.0
    %1870 = vmatpush1.msra.mxu0 0.0
    %1871 = vmatprep.subr.mxu0 0.0
    %1872 = vmatpush1.msra.mxu0 0.0
    %1873 = vmatprep.subr.mxu0 0.0
    %1874 = vmatpush1.msra.mxu0 0.0
    %1875 = vmatprep.mubr.f32.mxu0 0.0
    %1876 = vmatmul.mubr.f32.gmra.mrb[0].mxu0 %v1800
    %v1877 = vpop.f32.mrb[0].mxu0
    %v1878 = vadd.f32 0.0, %v1877
    %v1879 = vpop.f32.mrb[0].mxu0
    %1880 = vmatprep.mubr.f32.mxu0 0.0
    %1881 = vmatmul.mubr.f32.gmra.mrb[0].mxu0 %v1803
    %v1882 = vpop.f32.mrb[0].mxu0
    %v1883 = vadd.f32 0.0, %v1882
    %v1884 = vpop.f32.mrb[0].mxu0
    %1885 = vmatprep.mubr.f32.mxu0 0.0
    %1886 = vmatmul.mubr.f32.gmra.mrb[0].mxu0 %v1806
    %v1887 = vpop.f32.mrb[0].mxu0
    %v1888 = vadd.f32 0.0, %v1887
    %v1889 = vpop.f32.mrb[0].mxu0
    %1890 = vmatprep.mubr.f32.mxu0 0.0
    %1891 = vmatmul.mubr.f32.gmra.mrb[0].mxu0 %v1809
    %v1892 = vpop.f32.mrb[0].mxu0
    %v1893 = vadd.f32 0.0, %v1892
    %v1894 = vpop.f32.mrb[0].mxu0
    %1895 = vdwg.mxu0
    %s1896 = scalar_lea.vmem %s3, 320
    %1897 = vst.msk [vmem:[%s1896] sm:$0xff] %vm459, %v1878
    %1898 = vst.msk [vmem:[%s1896 + $0x8] sm:$0xff] %vm459, %v1883
    %1899 = vst.msk [vmem:[%s1896 + $0x10] sm:$0xff] %vm459, %v1888
    %1900 = vst.msk [vmem:[%s1896 + $0x18] sm:$0xff] %vm459, %v1893
    %1901 = vxpose.xlu0.b32.start [1/16] %v379, 128
    %1902 = vxpose.xlu0.b32.cont [2/16] %v384, 128
    %1903 = vxpose.xlu0.b32.cont [3/16] 0.0, 128
    %1904 = vxpose.xlu0.b32.cont [4/16] 0.0, 128
    %1905 = vxpose.xlu0.b32.cont [5/16] 0.0, 128
    %1906 = vxpose.xlu0.b32.cont [6/16] 0.0, 128
    %1907 = vxpose.xlu0.b32.cont [7/16] 0.0, 128
    %1908 = vxpose.xlu0.b32.cont [8/16] 0.0, 128
    %1909 = vxpose.xlu0.b32.cont [9/16] 0.0, 128
    %1910 = vxpose.xlu0.b32.cont [10/16] 0.0, 128
    %1911 = vxpose.xlu0.b32.cont [11/16] 0.0, 128
    %1912 = vxpose.xlu0.b32.cont [12/16] 0.0, 128
    %1913 = vxpose.xlu0.b32.cont [13/16] 0.0, 128
    %1914 = vxpose.xlu0.b32.cont [14/16] 0.0, 128
    %1915 = vxpose.xlu0.b32.cont [15/16] 0.0, 128
    %1916 = vxpose.xlu0.b32.end [16/16] 0.0, 128
    %v1917 = vpop.trf.xlu0
    %v1918 = vpop.trf.xlu0
    %v1919 = vpop.trf.xlu0
    %v1920 = vpop.trf.xlu0
    %v1921 = vpop.trf.xlu0
    %v1922 = vpop.trf.xlu0
    %v1923 = vpop.trf.xlu0
    %v1924 = vpop.trf.xlu0
    %v1925 = vpop.trf.xlu0
    %v1926 = vpop.trf.xlu0
    %v1927 = vpop.trf.xlu0
    %v1928 = vpop.trf.xlu0
    %v1929 = vpop.trf.xlu0
    %v1930 = vpop.trf.xlu0
    %v1931 = vpop.trf.xlu0
    %v1932 = vpop.trf.xlu0
    %v1934 = vsel %vm459, %v1917, 0
    %v1937 = vsel %vm459, %v1918, 0
    %v1940 = vsel %vm459, %v1919, 0
    %v1943 = vsel %vm459, %v1920, 0
    %1945 = vmatprep.subr.mxu0 0.0
    %1946 = vmatpush1.msra.mxu0 %v59
    %1947 = vmatprep.subr.mxu0 0.0
    %1948 = vmatpush1.msra.mxu0 %v60
    %1949 = vmatprep.subr.mxu0 0.0
    %1950 = vmatpush1.msra.mxu0 0.0
    %1951 = vmatprep.subr.mxu0 0.0
    %1952 = vmatpush1.msra.mxu0 0.0
    %1953 = vmatprep.subr.mxu0 0.0
    %1954 = vmatpush1.msra.mxu0 0.0
    %1955 = vmatprep.subr.mxu0 0.0
    %1956 = vmatpush1.msra.mxu0 0.0
    %1957 = vmatprep.subr.mxu0 0.0
    %1958 = vmatpush1.msra.mxu0 0.0
    %1959 = vmatprep.subr.mxu0 0.0
    %1960 = vmatpush1.msra.mxu0 0.0
    %1961 = vmatprep.subr.mxu0 0.0
    %1962 = vmatpush1.msra.mxu0 0.0
    %1963 = vmatprep.subr.mxu0 0.0
    %1964 = vmatpush1.msra.mxu0 0.0
    %1965 = vmatprep.subr.mxu0 0.0
    %1966 = vmatpush1.msra.mxu0 0.0
    %1967 = vmatprep.subr.mxu0 0.0
    %1968 = vmatpush1.msra.mxu0 0.0
    %1969 = vmatprep.subr.mxu0 0.0
    %1970 = vmatpush1.msra.mxu0 0.0
    %1971 = vmatprep.subr.mxu0 0.0
    %1972 = vmatpush1.msra.mxu0 0.0
    %1973 = vmatprep.subr.mxu0 0.0
    %1974 = vmatpush1.msra.mxu0 0.0
    %1975 = vmatprep.subr.mxu0 0.0
    %1976 = vmatpush1.msra.mxu0 0.0
    %1977 = vmatprep.subr.mxu0 0.0
    %1978 = vmatpush1.msra.mxu0 0.0
    %1979 = vmatprep.subr.mxu0 0.0
    %1980 = vmatpush1.msra.mxu0 0.0
    %1981 = vmatprep.subr.mxu0 0.0
    %1982 = vmatpush1.msra.mxu0 0.0
    %1983 = vmatprep.subr.mxu0 0.0
    %1984 = vmatpush1.msra.mxu0 0.0
    %1985 = vmatprep.subr.mxu0 0.0
    %1986 = vmatpush1.msra.mxu0 0.0
    %1987 = vmatprep.subr.mxu0 0.0
    %1988 = vmatpush1.msra.mxu0 0.0
    %1989 = vmatprep.subr.mxu0 0.0
    %1990 = vmatpush1.msra.mxu0 0.0
    %1991 = vmatprep.subr.mxu0 0.0
    %1992 = vmatpush1.msra.mxu0 0.0
    %1993 = vmatprep.subr.mxu0 0.0
    %1994 = vmatpush1.msra.mxu0 0.0
    %1995 = vmatprep.subr.mxu0 0.0
    %1996 = vmatpush1.msra.mxu0 0.0
    %1997 = vmatprep.subr.mxu0 0.0
    %1998 = vmatpush1.msra.mxu0 0.0
    %1999 = vmatprep.subr.mxu0 0.0
    %2000 = vmatpush1.msra.mxu0 0.0
    %2001 = vmatprep.subr.mxu0 0.0
    %2002 = vmatpush1.msra.mxu0 0.0
    %2003 = vmatprep.subr.mxu0 0.0
    %2004 = vmatpush1.msra.mxu0 0.0
    %2005 = vmatprep.subr.mxu0 0.0
    %2006 = vmatpush1.msra.mxu0 0.0
    %2007 = vmatprep.subr.mxu0 0.0
    %2008 = vmatpush1.msra.mxu0 0.0
    %2009 = vmatprep.mubr.f32.mxu0 0.0
    %2010 = vmatmul.mubr.f32.gmra.mrb[0].mxu0 %v1934
    %v2011 = vpop.f32.mrb[0].mxu0
    %v2012 = vadd.f32 0.0, %v2011
    %v2013 = vpop.f32.mrb[0].mxu0
    %2014 = vmatprep.mubr.f32.mxu0 0.0
    %2015 = vmatmul.mubr.f32.gmra.mrb[0].mxu0 %v1937
    %v2016 = vpop.f32.mrb[0].mxu0
    %v2017 = vadd.f32 0.0, %v2016
    %v2018 = vpop.f32.mrb[0].mxu0
    %2019 = vmatprep.mubr.f32.mxu0 0.0
    %2020 = vmatmul.mubr.f32.gmra.mrb[0].mxu0 %v1940
    %v2021 = vpop.f32.mrb[0].mxu0
    %v2022 = vadd.f32 0.0, %v2021
    %v2023 = vpop.f32.mrb[0].mxu0
    %2024 = vmatprep.mubr.f32.mxu0 0.0
    %2025 = vmatmul.mubr.f32.gmra.mrb[0].mxu0 %v1943
    %v2026 = vpop.f32.mrb[0].mxu0
    %v2027 = vadd.f32 0.0, %v2026
    %v2028 = vpop.f32.mrb[0].mxu0
    %2029 = vdwg.mxu0
    %s2030 = scalar_lea.vmem %s3, 352
    %2031 = vst.msk [vmem:[%s2030] sm:$0xff] %vm459, %v2012
    %2032 = vst.msk [vmem:[%s2030 + $0x8] sm:$0xff] %vm459, %v2017
    %2033 = vst.msk [vmem:[%s2030 + $0x10] sm:$0xff] %vm459, %v2022
    %2034 = vst.msk [vmem:[%s2030 + $0x18] sm:$0xff] %vm459, %v2027
    %2035 = vxpose.xlu0.b32.start [1/16] %v389, 128
    %2036 = vxpose.xlu0.b32.cont [2/16] %v394, 128
    %2037 = vxpose.xlu0.b32.cont [3/16] 0.0, 128
    %2038 = vxpose.xlu0.b32.cont [4/16] 0.0, 128
    %2039 = vxpose.xlu0.b32.cont [5/16] 0.0, 128
    %2040 = vxpose.xlu0.b32.cont [6/16] 0.0, 128
    %2041 = vxpose.xlu0.b32.cont [7/16] 0.0, 128
    %2042 = vxpose.xlu0.b32.cont [8/16] 0.0, 128
    %2043 = vxpose.xlu0.b32.cont [9/16] 0.0, 128
    %2044 = vxpose.xlu0.b32.cont [10/16] 0.0, 128
    %2045 = vxpose.xlu0.b32.cont [11/16] 0.0, 128
    %2046 = vxpose.xlu0.b32.cont [12/16] 0.0, 128
    %2047 = vxpose.xlu0.b32.cont [13/16] 0.0, 128
    %2048 = vxpose.xlu0.b32.cont [14/16] 0.0, 128
    %2049 = vxpose.xlu0.b32.cont [15/16] 0.0, 128
    %2050 = vxpose.xlu0.b32.end [16/16] 0.0, 128
    %v2051 = vpop.trf.xlu0
    %v2052 = vpop.trf.xlu0
    %v2053 = vpop.trf.xlu0
    %v2054 = vpop.trf.xlu0
    %v2055 = vpop.trf.xlu0
    %v2056 = vpop.trf.xlu0
    %v2057 = vpop.trf.xlu0
    %v2058 = vpop.trf.xlu0
    %v2059 = vpop.trf.xlu0
    %v2060 = vpop.trf.xlu0
    %v2061 = vpop.trf.xlu0
    %v2062 = vpop.trf.xlu0
    %v2063 = vpop.trf.xlu0
    %v2064 = vpop.trf.xlu0
    %v2065 = vpop.trf.xlu0
    %v2066 = vpop.trf.xlu0
    %v2068 = vsel %vm459, %v2051, 0
    %v2071 = vsel %vm459, %v2052, 0
    %v2074 = vsel %vm459, %v2053, 0
    %v2077 = vsel %vm459, %v2054, 0
    %2079 = vmatprep.subr.mxu0 0.0
    %2080 = vmatpush1.msra.mxu0 %v59
    %2081 = vmatprep.subr.mxu0 0.0
    %2082 = vmatpush1.msra.mxu0 %v60
    %2083 = vmatprep.subr.mxu0 0.0
    %2084 = vmatpush1.msra.mxu0 0.0
    %2085 = vmatprep.subr.mxu0 0.0
    %2086 = vmatpush1.msra.mxu0 0.0
    %2087 = vmatprep.subr.mxu0 0.0
    %2088 = vmatpush1.msra.mxu0 0.0
    %2089 = vmatprep.subr.mxu0 0.0
    %2090 = vmatpush1.msra.mxu0 0.0
    %2091 = vmatprep.subr.mxu0 0.0
    %2092 = vmatpush1.msra.mxu0 0.0
    %2093 = vmatprep.subr.mxu0 0.0
    %2094 = vmatpush1.msra.mxu0 0.0
    %2095 = vmatprep.subr.mxu0 0.0
    %2096 = vmatpush1.msra.mxu0 0.0
    %2097 = vmatprep.subr.mxu0 0.0
    %2098 = vmatpush1.msra.mxu0 0.0
    %2099 = vmatprep.subr.mxu0 0.0
    %2100 = vmatpush1.msra.mxu0 0.0
    %2101 = vmatprep.subr.mxu0 0.0
    %2102 = vmatpush1.msra.mxu0 0.0
    %2103 = vmatprep.subr.mxu0 0.0
    %2104 = vmatpush1.msra.mxu0 0.0
    %2105 = vmatprep.subr.mxu0 0.0
    %2106 = vmatpush1.msra.mxu0 0.0
    %2107 = vmatprep.subr.mxu0 0.0
    %2108 = vmatpush1.msra.mxu0 0.0
    %2109 = vmatprep.subr.mxu0 0.0
    %2110 = vmatpush1.msra.mxu0 0.0
    %2111 = vmatprep.subr.mxu0 0.0
    %2112 = vmatpush1.msra.mxu0 0.0
    %2113 = vmatprep.subr.mxu0 0.0
    %2114 = vmatpush1.msra.mxu0 0.0
    %2115 = vmatprep.subr.mxu0 0.0
    %2116 = vmatpush1.msra.mxu0 0.0
    %2117 = vmatprep.subr.mxu0 0.0
    %2118 = vmatpush1.msra.mxu0 0.0
    %2119 = vmatprep.subr.mxu0 0.0
    %2120 = vmatpush1.msra.mxu0 0.0
    %2121 = vmatprep.subr.mxu0 0.0
    %2122 = vmatpush1.msra.mxu0 0.0
    %2123 = vmatprep.subr.mxu0 0.0
    %2124 = vmatpush1.msra.mxu0 0.0
    %2125 = vmatprep.subr.mxu0 0.0
    %2126 = vmatpush1.msra.mxu0 0.0
    %2127 = vmatprep.subr.mxu0 0.0
    %2128 = vmatpush1.msra.mxu0 0.0
    %2129 = vmatprep.subr.mxu0 0.0
    %2130 = vmatpush1.msra.mxu0 0.0
    %2131 = vmatprep.subr.mxu0 0.0
    %2132 = vmatpush1.msra.mxu0 0.0
    %2133 = vmatprep.subr.mxu0 0.0
    %2134 = vmatpush1.msra.mxu0 0.0
    %2135 = vmatprep.subr.mxu0 0.0
    %2136 = vmatpush1.msra.mxu0 0.0
    %2137 = vmatprep.subr.mxu0 0.0
    %2138 = vmatpush1.msra.mxu0 0.0
    %2139 = vmatprep.subr.mxu0 0.0
    %2140 = vmatpush1.msra.mxu0 0.0
    %2141 = vmatprep.subr.mxu0 0.0
    %2142 = vmatpush1.msra.mxu0 0.0
    %2143 = vmatprep.mubr.f32.mxu0 0.0
    %2144 = vmatmul.mubr.f32.gmra.mrb[0].mxu0 %v2068
    %v2145 = vpop.f32.mrb[0].mxu0
    %v2146 = vadd.f32 0.0, %v2145
    %v2147 = vpop.f32.mrb[0].mxu0
    %2148 = vmatprep.mubr.f32.mxu0 0.0
    %2149 = vmatmul.mubr.f32.gmra.mrb[0].mxu0 %v2071
    %v2150 = vpop.f32.mrb[0].mxu0
    %v2151 = vadd.f32 0.0, %v2150
    %v2152 = vpop.f32.mrb[0].mxu0
    %2153 = vmatprep.mubr.f32.mxu0 0.0
    %2154 = vmatmul.mubr.f32.gmra.mrb[0].mxu0 %v2074
    %v2155 = vpop.f32.mrb[0].mxu0
    %v2156 = vadd.f32 0.0, %v2155
    %v2157 = vpop.f32.mrb[0].mxu0
    %2158 = vmatprep.mubr.f32.mxu0 0.0
    %2159 = vmatmul.mubr.f32.gmra.mrb[0].mxu0 %v2077
    %v2160 = vpop.f32.mrb[0].mxu0
    %v2161 = vadd.f32 0.0, %v2160
    %v2162 = vpop.f32.mrb[0].mxu0
    %2163 = vdwg.mxu0
    %s2164 = scalar_lea.vmem %s3, 384
    %2165 = vst.msk [vmem:[%s2164] sm:$0xff] %vm459, %v2146
    %2166 = vst.msk [vmem:[%s2164 + $0x8] sm:$0xff] %vm459, %v2151
    %2167 = vst.msk [vmem:[%s2164 + $0x10] sm:$0xff] %vm459, %v2156
    %2168 = vst.msk [vmem:[%s2164 + $0x18] sm:$0xff] %vm459, %v2161
    %2169 = vxpose.xlu0.b32.start [1/16] %v399, 128
    %2170 = vxpose.xlu0.b32.cont [2/16] %v404, 128
    %2171 = vxpose.xlu0.b32.cont [3/16] 0.0, 128
    %2172 = vxpose.xlu0.b32.cont [4/16] 0.0, 128
    %2173 = vxpose.xlu0.b32.cont [5/16] 0.0, 128
    %2174 = vxpose.xlu0.b32.cont [6/16] 0.0, 128
    %2175 = vxpose.xlu0.b32.cont [7/16] 0.0, 128
    %2176 = vxpose.xlu0.b32.cont [8/16] 0.0, 128
    %2177 = vxpose.xlu0.b32.cont [9/16] 0.0, 128
    %2178 = vxpose.xlu0.b32.cont [10/16] 0.0, 128
    %2179 = vxpose.xlu0.b32.cont [11/16] 0.0, 128
    %2180 = vxpose.xlu0.b32.cont [12/16] 0.0, 128
    %2181 = vxpose.xlu0.b32.cont [13/16] 0.0, 128
    %2182 = vxpose.xlu0.b32.cont [14/16] 0.0, 128
    %2183 = vxpose.xlu0.b32.cont [15/16] 0.0, 128
    %2184 = vxpose.xlu0.b32.end [16/16] 0.0, 128
    %v2185 = vpop.trf.xlu0
    %v2186 = vpop.trf.xlu0
    %v2187 = vpop.trf.xlu0
    %v2188 = vpop.trf.xlu0
    %v2189 = vpop.trf.xlu0
    %v2190 = vpop.trf.xlu0
    %v2191 = vpop.trf.xlu0
    %v2192 = vpop.trf.xlu0
    %v2193 = vpop.trf.xlu0
    %v2194 = vpop.trf.xlu0
    %v2195 = vpop.trf.xlu0
    %v2196 = vpop.trf.xlu0
    %v2197 = vpop.trf.xlu0
    %v2198 = vpop.trf.xlu0
    %v2199 = vpop.trf.xlu0
    %v2200 = vpop.trf.xlu0
    %v2202 = vsel %vm459, %v2185, 0
    %v2205 = vsel %vm459, %v2186, 0
    %v2208 = vsel %vm459, %v2187, 0
    %v2211 = vsel %vm459, %v2188, 0
    %2213 = vmatprep.subr.mxu0 0.0
    %2214 = vmatpush1.msra.mxu0 %v59
    %2215 = vmatprep.subr.mxu0 0.0
    %2216 = vmatpush1.msra.mxu0 %v60
    %2217 = vmatprep.subr.mxu0 0.0
    %2218 = vmatpush1.msra.mxu0 0.0
    %2219 = vmatprep.subr.mxu0 0.0
    %2220 = vmatpush1.msra.mxu0 0.0
    %2221 = vmatprep.subr.mxu0 0.0
    %2222 = vmatpush1.msra.mxu0 0.0
    %2223 = vmatprep.subr.mxu0 0.0
    %2224 = vmatpush1.msra.mxu0 0.0
    %2225 = vmatprep.subr.mxu0 0.0
    %2226 = vmatpush1.msra.mxu0 0.0
    %2227 = vmatprep.subr.mxu0 0.0
    %2228 = vmatpush1.msra.mxu0 0.0
    %2229 = vmatprep.subr.mxu0 0.0
    %2230 = vmatpush1.msra.mxu0 0.0
    %2231 = vmatprep.subr.mxu0 0.0
    %2232 = vmatpush1.msra.mxu0 0.0
    %2233 = vmatprep.subr.mxu0 0.0
    %2234 = vmatpush1.msra.mxu0 0.0
    %2235 = vmatprep.subr.mxu0 0.0
    %2236 = vmatpush1.msra.mxu0 0.0
    %2237 = vmatprep.subr.mxu0 0.0
    %2238 = vmatpush1.msra.mxu0 0.0
    %2239 = vmatprep.subr.mxu0 0.0
    %2240 = vmatpush1.msra.mxu0 0.0
    %2241 = vmatprep.subr.mxu0 0.0
    %2242 = vmatpush1.msra.mxu0 0.0
    %2243 = vmatprep.subr.mxu0 0.0
    %2244 = vmatpush1.msra.mxu0 0.0
    %2245 = vmatprep.subr.mxu0 0.0
    %2246 = vmatpush1.msra.mxu0 0.0
    %2247 = vmatprep.subr.mxu0 0.0
    %2248 = vmatpush1.msra.mxu0 0.0
    %2249 = vmatprep.subr.mxu0 0.0
    %2250 = vmatpush1.msra.mxu0 0.0
    %2251 = vmatprep.subr.mxu0 0.0
    %2252 = vmatpush1.msra.mxu0 0.0
    %2253 = vmatprep.subr.mxu0 0.0
    %2254 = vmatpush1.msra.mxu0 0.0
    %2255 = vmatprep.subr.mxu0 0.0
    %2256 = vmatpush1.msra.mxu0 0.0
    %2257 = vmatprep.subr.mxu0 0.0
    %2258 = vmatpush1.msra.mxu0 0.0
    %2259 = vmatprep.subr.mxu0 0.0
    %2260 = vmatpush1.msra.mxu0 0.0
    %2261 = vmatprep.subr.mxu0 0.0
    %2262 = vmatpush1.msra.mxu0 0.0
    %2263 = vmatprep.subr.mxu0 0.0
    %2264 = vmatpush1.msra.mxu0 0.0
    %2265 = vmatprep.subr.mxu0 0.0
    %2266 = vmatpush1.msra.mxu0 0.0
    %2267 = vmatprep.subr.mxu0 0.0
    %2268 = vmatpush1.msra.mxu0 0.0
    %2269 = vmatprep.subr.mxu0 0.0
    %2270 = vmatpush1.msra.mxu0 0.0
    %2271 = vmatprep.subr.mxu0 0.0
    %2272 = vmatpush1.msra.mxu0 0.0
    %2273 = vmatprep.subr.mxu0 0.0
    %2274 = vmatpush1.msra.mxu0 0.0
    %2275 = vmatprep.subr.mxu0 0.0
    %2276 = vmatpush1.msra.mxu0 0.0
    %2277 = vmatprep.mubr.f32.mxu0 0.0
    %2278 = vmatmul.mubr.f32.gmra.mrb[0].mxu0 %v2202
    %v2279 = vpop.f32.mrb[0].mxu0
    %v2280 = vadd.f32 0.0, %v2279
    %v2281 = vpop.f32.mrb[0].mxu0
    %2282 = vmatprep.mubr.f32.mxu0 0.0
    %2283 = vmatmul.mubr.f32.gmra.mrb[0].mxu0 %v2205
    %v2284 = vpop.f32.mrb[0].mxu0
    %v2285 = vadd.f32 0.0, %v2284
    %v2286 = vpop.f32.mrb[0].mxu0
    %2287 = vmatprep.mubr.f32.mxu0 0.0
    %2288 = vmatmul.mubr.f32.gmra.mrb[0].mxu0 %v2208
    %v2289 = vpop.f32.mrb[0].mxu0
    %v2290 = vadd.f32 0.0, %v2289
    %v2291 = vpop.f32.mrb[0].mxu0
    %2292 = vmatprep.mubr.f32.mxu0 0.0
    %2293 = vmatmul.mubr.f32.gmra.mrb[0].mxu0 %v2211
    %v2294 = vpop.f32.mrb[0].mxu0
    %v2295 = vadd.f32 0.0, %v2294
    %v2296 = vpop.f32.mrb[0].mxu0
    %2297 = vdwg.mxu0
    %s2298 = scalar_lea.vmem %s3, 416
    %2299 = vst.msk [vmem:[%s2298] sm:$0xff] %vm459, %v2280
    %2300 = vst.msk [vmem:[%s2298 + $0x8] sm:$0xff] %vm459, %v2285
    %2301 = vst.msk [vmem:[%s2298 + $0x10] sm:$0xff] %vm459, %v2290
    %2302 = vst.msk [vmem:[%s2298 + $0x18] sm:$0xff] %vm459, %v2295
    %2303 = vxpose.xlu0.b32.start [1/16] %v409, 128
    %2304 = vxpose.xlu0.b32.cont [2/16] %v414, 128
    %2305 = vxpose.xlu0.b32.cont [3/16] 0.0, 128
    %2306 = vxpose.xlu0.b32.cont [4/16] 0.0, 128
    %2307 = vxpose.xlu0.b32.cont [5/16] 0.0, 128
    %2308 = vxpose.xlu0.b32.cont [6/16] 0.0, 128
    %2309 = vxpose.xlu0.b32.cont [7/16] 0.0, 128
    %2310 = vxpose.xlu0.b32.cont [8/16] 0.0, 128
    %2311 = vxpose.xlu0.b32.cont [9/16] 0.0, 128
    %2312 = vxpose.xlu0.b32.cont [10/16] 0.0, 128
    %2313 = vxpose.xlu0.b32.cont [11/16] 0.0, 128
    %2314 = vxpose.xlu0.b32.cont [12/16] 0.0, 128
    %2315 = vxpose.xlu0.b32.cont [13/16] 0.0, 128
    %2316 = vxpose.xlu0.b32.cont [14/16] 0.0, 128
    %2317 = vxpose.xlu0.b32.cont [15/16] 0.0, 128
    %2318 = vxpose.xlu0.b32.end [16/16] 0.0, 128
    %v2319 = vpop.trf.xlu0
    %v2320 = vpop.trf.xlu0
    %v2321 = vpop.trf.xlu0
    %v2322 = vpop.trf.xlu0
    %v2323 = vpop.trf.xlu0
    %v2324 = vpop.trf.xlu0
    %v2325 = vpop.trf.xlu0
    %v2326 = vpop.trf.xlu0
    %v2327 = vpop.trf.xlu0
    %v2328 = vpop.trf.xlu0
    %v2329 = vpop.trf.xlu0
    %v2330 = vpop.trf.xlu0
    %v2331 = vpop.trf.xlu0
    %v2332 = vpop.trf.xlu0
    %v2333 = vpop.trf.xlu0
    %v2334 = vpop.trf.xlu0
    %v2336 = vsel %vm459, %v2319, 0
    %v2339 = vsel %vm459, %v2320, 0
    %v2342 = vsel %vm459, %v2321, 0
    %v2345 = vsel %vm459, %v2322, 0
    %2347 = vmatprep.subr.mxu0 0.0
    %2348 = vmatpush1.msra.mxu0 %v59
    %2349 = vmatprep.subr.mxu0 0.0
    %2350 = vmatpush1.msra.mxu0 %v60
    %2351 = vmatprep.subr.mxu0 0.0
    %2352 = vmatpush1.msra.mxu0 0.0
    %2353 = vmatprep.subr.mxu0 0.0
    %2354 = vmatpush1.msra.mxu0 0.0
    %2355 = vmatprep.subr.mxu0 0.0
    %2356 = vmatpush1.msra.mxu0 0.0
    %2357 = vmatprep.subr.mxu0 0.0
    %2358 = vmatpush1.msra.mxu0 0.0
    %2359 = vmatprep.subr.mxu0 0.0
    %2360 = vmatpush1.msra.mxu0 0.0
    %2361 = vmatprep.subr.mxu0 0.0
    %2362 = vmatpush1.msra.mxu0 0.0
    %2363 = vmatprep.subr.mxu0 0.0
    %2364 = vmatpush1.msra.mxu0 0.0
    %2365 = vmatprep.subr.mxu0 0.0
    %2366 = vmatpush1.msra.mxu0 0.0
    %2367 = vmatprep.subr.mxu0 0.0
    %2368 = vmatpush1.msra.mxu0 0.0
    %2369 = vmatprep.subr.mxu0 0.0
    %2370 = vmatpush1.msra.mxu0 0.0
    %2371 = vmatprep.subr.mxu0 0.0
    %2372 = vmatpush1.msra.mxu0 0.0
    %2373 = vmatprep.subr.mxu0 0.0
    %2374 = vmatpush1.msra.mxu0 0.0
    %2375 = vmatprep.subr.mxu0 0.0
    %2376 = vmatpush1.msra.mxu0 0.0
    %2377 = vmatprep.subr.mxu0 0.0
    %2378 = vmatpush1.msra.mxu0 0.0
    %2379 = vmatprep.subr.mxu0 0.0
    %2380 = vmatpush1.msra.mxu0 0.0
    %2381 = vmatprep.subr.mxu0 0.0
    %2382 = vmatpush1.msra.mxu0 0.0
    %2383 = vmatprep.subr.mxu0 0.0
    %2384 = vmatpush1.msra.mxu0 0.0
    %2385 = vmatprep.subr.mxu0 0.0
    %2386 = vmatpush1.msra.mxu0 0.0
    %2387 = vmatprep.subr.mxu0 0.0
    %2388 = vmatpush1.msra.mxu0 0.0
    %2389 = vmatprep.subr.mxu0 0.0
    %2390 = vmatpush1.msra.mxu0 0.0
    %2391 = vmatprep.subr.mxu0 0.0
    %2392 = vmatpush1.msra.mxu0 0.0
    %2393 = vmatprep.subr.mxu0 0.0
    %2394 = vmatpush1.msra.mxu0 0.0
    %2395 = vmatprep.subr.mxu0 0.0
    %2396 = vmatpush1.msra.mxu0 0.0
    %2397 = vmatprep.subr.mxu0 0.0
    %2398 = vmatpush1.msra.mxu0 0.0
    %2399 = vmatprep.subr.mxu0 0.0
    %2400 = vmatpush1.msra.mxu0 0.0
    %2401 = vmatprep.subr.mxu0 0.0
    %2402 = vmatpush1.msra.mxu0 0.0
    %2403 = vmatprep.subr.mxu0 0.0
    %2404 = vmatpush1.msra.mxu0 0.0
    %2405 = vmatprep.subr.mxu0 0.0
    %2406 = vmatpush1.msra.mxu0 0.0
    %2407 = vmatprep.subr.mxu0 0.0
    %2408 = vmatpush1.msra.mxu0 0.0
    %2409 = vmatprep.subr.mxu0 0.0
    %2410 = vmatpush1.msra.mxu0 0.0
    %2411 = vmatprep.mubr.f32.mxu0 0.0
    %2412 = vmatmul.mubr.f32.gmra.mrb[0].mxu0 %v2336
    %v2413 = vpop.f32.mrb[0].mxu0
    %v2414 = vadd.f32 0.0, %v2413
    %v2415 = vpop.f32.mrb[0].mxu0
    %2416 = vmatprep.mubr.f32.mxu0 0.0
    %2417 = vmatmul.mubr.f32.gmra.mrb[0].mxu0 %v2339
    %v2418 = vpop.f32.mrb[0].mxu0
    %v2419 = vadd.f32 0.0, %v2418
    %v2420 = vpop.f32.mrb[0].mxu0
    %2421 = vmatprep.mubr.f32.mxu0 0.0
    %2422 = vmatmul.mubr.f32.gmra.mrb[0].mxu0 %v2342
    %v2423 = vpop.f32.mrb[0].mxu0
    %v2424 = vadd.f32 0.0, %v2423
    %v2425 = vpop.f32.mrb[0].mxu0
    %2426 = vmatprep.mubr.f32.mxu0 0.0
    %2427 = vmatmul.mubr.f32.gmra.mrb[0].mxu0 %v2345
    %v2428 = vpop.f32.mrb[0].mxu0
    %v2429 = vadd.f32 0.0, %v2428
    %v2430 = vpop.f32.mrb[0].mxu0
    %2431 = vdwg.mxu0
    %s2432 = scalar_lea.vmem %s3, 448
    %2433 = vst.msk [vmem:[%s2432] sm:$0xff] %vm459, %v2414
    %2434 = vst.msk [vmem:[%s2432 + $0x8] sm:$0xff] %vm459, %v2419
    %2435 = vst.msk [vmem:[%s2432 + $0x10] sm:$0xff] %vm459, %v2424
    %2436 = vst.msk [vmem:[%s2432 + $0x18] sm:$0xff] %vm459, %v2429
    %2437 = vxpose.xlu0.b32.start [1/16] %v419, 128
    %2438 = vxpose.xlu0.b32.cont [2/16] %v424, 128
    %2439 = vxpose.xlu0.b32.cont [3/16] 0.0, 128
    %2440 = vxpose.xlu0.b32.cont [4/16] 0.0, 128
    %2441 = vxpose.xlu0.b32.cont [5/16] 0.0, 128
    %2442 = vxpose.xlu0.b32.cont [6/16] 0.0, 128
    %2443 = vxpose.xlu0.b32.cont [7/16] 0.0, 128
    %2444 = vxpose.xlu0.b32.cont [8/16] 0.0, 128
    %2445 = vxpose.xlu0.b32.cont [9/16] 0.0, 128
    %2446 = vxpose.xlu0.b32.cont [10/16] 0.0, 128
    %2447 = vxpose.xlu0.b32.cont [11/16] 0.0, 128
    %2448 = vxpose.xlu0.b32.cont [12/16] 0.0, 128
    %2449 = vxpose.xlu0.b32.cont [13/16] 0.0, 128
    %2450 = vxpose.xlu0.b32.cont [14/16] 0.0, 128
    %2451 = vxpose.xlu0.b32.cont [15/16] 0.0, 128
    %2452 = vxpose.xlu0.b32.end [16/16] 0.0, 128
    %v2453 = vpop.trf.xlu0
    %v2454 = vpop.trf.xlu0
    %v2455 = vpop.trf.xlu0
    %v2456 = vpop.trf.xlu0
    %v2457 = vpop.trf.xlu0
    %v2458 = vpop.trf.xlu0
    %v2459 = vpop.trf.xlu0
    %v2460 = vpop.trf.xlu0
    %v2461 = vpop.trf.xlu0
    %v2462 = vpop.trf.xlu0
    %v2463 = vpop.trf.xlu0
    %v2464 = vpop.trf.xlu0
    %v2465 = vpop.trf.xlu0
    %v2466 = vpop.trf.xlu0
    %v2467 = vpop.trf.xlu0
    %v2468 = vpop.trf.xlu0
    %v2470 = vsel %vm459, %v2453, 0
    %v2473 = vsel %vm459, %v2454, 0
    %v2476 = vsel %vm459, %v2455, 0
    %v2479 = vsel %vm459, %v2456, 0
    %2481 = vmatprep.subr.mxu0 0.0
    %2482 = vmatpush1.msra.mxu0 %v59
    %2483 = vmatprep.subr.mxu0 0.0
    %2484 = vmatpush1.msra.mxu0 %v60
    %2485 = vmatprep.subr.mxu0 0.0
    %2486 = vmatpush1.msra.mxu0 0.0
    %2487 = vmatprep.subr.mxu0 0.0
    %2488 = vmatpush1.msra.mxu0 0.0
    %2489 = vmatprep.subr.mxu0 0.0
    %2490 = vmatpush1.msra.mxu0 0.0
    %2491 = vmatprep.subr.mxu0 0.0
    %2492 = vmatpush1.msra.mxu0 0.0
    %2493 = vmatprep.subr.mxu0 0.0
    %2494 = vmatpush1.msra.mxu0 0.0
    %2495 = vmatprep.subr.mxu0 0.0
    %2496 = vmatpush1.msra.mxu0 0.0
    %2497 = vmatprep.subr.mxu0 0.0
    %2498 = vmatpush1.msra.mxu0 0.0
    %2499 = vmatprep.subr.mxu0 0.0
    %2500 = vmatpush1.msra.mxu0 0.0
    %2501 = vmatprep.subr.mxu0 0.0
    %2502 = vmatpush1.msra.mxu0 0.0
    %2503 = vmatprep.subr.mxu0 0.0
    %2504 = vmatpush1.msra.mxu0 0.0
    %2505 = vmatprep.subr.mxu0 0.0
    %2506 = vmatpush1.msra.mxu0 0.0
    %2507 = vmatprep.subr.mxu0 0.0
    %2508 = vmatpush1.msra.mxu0 0.0
    %2509 = vmatprep.subr.mxu0 0.0
    %2510 = vmatpush1.msra.mxu0 0.0
    %2511 = vmatprep.subr.mxu0 0.0
    %2512 = vmatpush1.msra.mxu0 0.0
    %2513 = vmatprep.subr.mxu0 0.0
    %2514 = vmatpush1.msra.mxu0 0.0
    %2515 = vmatprep.subr.mxu0 0.0
    %2516 = vmatpush1.msra.mxu0 0.0
    %2517 = vmatprep.subr.mxu0 0.0
    %2518 = vmatpush1.msra.mxu0 0.0
    %2519 = vmatprep.subr.mxu0 0.0
    %2520 = vmatpush1.msra.mxu0 0.0
    %2521 = vmatprep.subr.mxu0 0.0
    %2522 = vmatpush1.msra.mxu0 0.0
    %2523 = vmatprep.subr.mxu0 0.0
    %2524 = vmatpush1.msra.mxu0 0.0
    %2525 = vmatprep.subr.mxu0 0.0
    %2526 = vmatpush1.msra.mxu0 0.0
    %2527 = vmatprep.subr.mxu0 0.0
    %2528 = vmatpush1.msra.mxu0 0.0
    %2529 = vmatprep.subr.mxu0 0.0
    %2530 = vmatpush1.msra.mxu0 0.0
    %2531 = vmatprep.subr.mxu0 0.0
    %2532 = vmatpush1.msra.mxu0 0.0
    %2533 = vmatprep.subr.mxu0 0.0
    %2534 = vmatpush1.msra.mxu0 0.0
    %2535 = vmatprep.subr.mxu0 0.0
    %2536 = vmatpush1.msra.mxu0 0.0
    %2537 = vmatprep.subr.mxu0 0.0
    %2538 = vmatpush1.msra.mxu0 0.0
    %2539 = vmatprep.subr.mxu0 0.0
    %2540 = vmatpush1.msra.mxu0 0.0
    %2541 = vmatprep.subr.mxu0 0.0
    %2542 = vmatpush1.msra.mxu0 0.0
    %2543 = vmatprep.subr.mxu0 0.0
    %2544 = vmatpush1.msra.mxu0 0.0
    %2545 = vmatprep.mubr.f32.mxu0 0.0
    %2546 = vmatmul.mubr.f32.gmra.mrb[0].mxu0 %v2470
    %v2547 = vpop.f32.mrb[0].mxu0
    %v2548 = vadd.f32 0.0, %v2547
    %v2549 = vpop.f32.mrb[0].mxu0
    %2550 = vmatprep.mubr.f32.mxu0 0.0
    %2551 = vmatmul.mubr.f32.gmra.mrb[0].mxu0 %v2473
    %v2552 = vpop.f32.mrb[0].mxu0
    %v2553 = vadd.f32 0.0, %v2552
    %v2554 = vpop.f32.mrb[0].mxu0
    %2555 = vmatprep.mubr.f32.mxu0 0.0
    %2556 = vmatmul.mubr.f32.gmra.mrb[0].mxu0 %v2476
    %v2557 = vpop.f32.mrb[0].mxu0
    %v2558 = vadd.f32 0.0, %v2557
    %v2559 = vpop.f32.mrb[0].mxu0
    %2560 = vmatprep.mubr.f32.mxu0 0.0
    %2561 = vmatmul.mubr.f32.gmra.mrb[0].mxu0 %v2479
    %v2562 = vpop.f32.mrb[0].mxu0
    %v2563 = vadd.f32 0.0, %v2562
    %v2564 = vpop.f32.mrb[0].mxu0
    %2565 = vdwg.mxu0
    %s2566 = scalar_lea.vmem %s3, 480
    %2567 = vst.msk [vmem:[%s2566] sm:$0xff] %vm459, %v2548
    %2568 = vst.msk [vmem:[%s2566 + $0x8] sm:$0xff] %vm459, %v2553
    %2569 = vst.msk [vmem:[%s2566 + $0x10] sm:$0xff] %vm459, %v2558
    %2570 = vst.msk [vmem:[%s2566 + $0x18] sm:$0xff] %vm459, %v2563
    // Predicated region
    $region26: #{sepnet_linear_qkv.1} parent=1 // pred_check
      _
    $region27: #{sepnet_linear_qkv.1} parent=1 // pred_check_branch
      %2572 = sbr.rel (0) target = $region29
    $region28: #{sepnet_linear_qkv.1} parent=1 // pred_region
      _
    $region29: #{sepnet_linear_qkv.1} parent=1 // pred_fallthru
      _
    // Predicated region
    $region30: #{sepnet_linear_qkv.1} parent=1 // pred_check
      _
    $region31: #{sepnet_linear_qkv.1} parent=1 // pred_check_branch
      %2574 = sbr.rel (0) target = $region33
    $region32: #{sepnet_linear_qkv.1} parent=1 // pred_region
      _
    $region33: #{sepnet_linear_qkv.1} parent=1 // pred_fallthru
      _
    %2575 = vsyncpa [#allocation3], 1
    %2576 = vsyncpa [#allocation5], 1

</llo_original>
